<compile_context>
chip_gen: v5e
topology: v5e:2x2
jax: 0.10.0
libtpu: 0.0.40
codegen_flags: <defaults>
</compile_context>

<pallas_src>
import functools

import jax
import jax.numpy as jnp
from jax.experimental import pallas as pl
from jax.experimental.pallas import tpu as pltpu


def _block_kernel(x_ref, w0_ref, b0_ref, w1_ref, b1_ref, o_ref, buf_ref,
                  *, C, H, W, d, B_blk, lead, mxu_dtype):
    """Fused dilated residual block for B_blk images.

    x_ref  : (B_blk*C, L)          input, batch folded into sublanes (VMEM)
    w0_ref : (3, C, 3C)            conv0 weights, [kx, cout, ky*C+cin] (VMEM)
    b0_ref : (C, 1)                conv0 bias (VMEM, f32)
    w1_ref : (3, C, 3C)            conv1 weights (VMEM)
    b1_ref : (C, 1)                conv1 bias (VMEM, f32)
    o_ref  : (B_blk*C, L)          output (VMEM)
    buf_ref: (3C, lead + L + P)    f32 scratch: plane replicated at 3 vertical
                                   shifts so each kx tap group is one slice.
    """
    L = H * W
    dW = d * W
    P = dW + d
    f32 = jnp.float32

    # ---- per-grid-step setup, hoisted out of the unrolled image loop ----
    # Zero only the border columns the taps actually read.  The plane regions
    # are fully overwritten before every tap read and these borders are never
    # dirtied, so this tiny sweep (O(C*P) elements) is all that is needed.
    buf_ref[pl.ds(0 * C, C), pl.ds(lead - d, P)] = jnp.zeros((C, P), f32)
    buf_ref[pl.ds(1 * C, C), pl.ds(lead - d, d)] = jnp.zeros((C, d), f32)
    buf_ref[pl.ds(1 * C, C), pl.ds(lead + L, d)] = jnp.zeros((C, d), f32)
    buf_ref[pl.ds(2 * C, C), pl.ds(lead + L - dW, P)] = jnp.zeros((C, P), f32)

    # Lane masks killing the row wrap-around of horizontally shifted flat
    # slices (they depend only on kx and the output pixel, so they commute
    # with the ky/ci contraction and are applied post-matmul).
    col = jax.lax.broadcasted_iota(jnp.int32, (1, L), 1) % W
    m_left = (col >= d).astype(f32)        # kx == 0  (dx = -d)
    m_right = (col < W - d).astype(f32)    # kx == 2  (dx = +d)
    masks = (m_left, None, m_right)

    # Bias broadcasts hoisted once per step (JAX does not CSE broadcast_in_dim).
    bias0 = jnp.broadcast_to(b0_ref[...].astype(f32), (C, L))
    bias1 = jnp.broadcast_to(b1_ref[...].astype(f32), (C, L))

    def write_plane(val):
        # Store the (C, L) plane three times, vertically shifted by (ky-1)*d
        # rows, so that for each kx the three ky taps form one contiguous
        # (3C, L) slice of the scratch (one matmul per kx, K = 3C).
        for ky in range(3):
            buf_ref[pl.ds(ky * C, C), pl.ds(lead - (ky - 1) * dW, L)] = val

    def dilated_conv(wg_ref, bias):
        # out[co, p] = bias[co] + sum_kx mask_kx[p] *
        #              sum_{ky,ci} Wg[kx][co, ky*C+ci] * plane[ci, p+(ky-1)dW+(kx-1)d]
        acc = bias
        for kx in range(3):
            rhs = buf_ref[:, pl.ds(lead + (kx - 1) * d, L)]        # (3C, L)
            part = jnp.dot(wg_ref[kx].astype(mxu_dtype),
                           rhs.astype(mxu_dtype),
                           preferred_element_type=f32)             # (C, L)
            if masks[kx] is not None:
                part = part * masks[kx]
            acc = acc + part
        return acc

    for b in range(B_blk):
        img = pl.ds(b * C, C)
        write_plane(x_ref[img, :].astype(f32))                     # pad(x)
        mid = jnp.maximum(dilated_conv(w0_ref, bias0), 0.0)        # ReLU(conv0)
        write_plane(mid)                                           # pad(relu)
        # Re-read x from VMEM for the residual (keeps vreg live ranges short).
        y = x_ref[img, :].astype(f32) + dilated_conv(w1_ref, bias1)
        o_ref[img, :] = y.astype(o_ref.dtype)


def _group_weights(w, C, dtype):
    # PyTorch OIHW (cout, cin, ky, kx) -> (kx, cout, ky*C + cin).
    return jnp.transpose(w, (3, 0, 2, 1)).reshape(3, C, 3 * C).astype(dtype)


def _pick_b_blk(N, C, L, itemsize, block_budget_bytes):
    """Largest divisor of N whose double-buffered in+out blocks fit the budget,
    preferring sublane-aligned row blocks and (for v7x megacore) >= 2 grid steps."""
    per_image = C * L * itemsize
    best, best_key = 1, None
    for b in range(1, N + 1):
        if N % b:
            continue
        if b > 1 and 4 * b * per_image > block_budget_bytes:
            continue
        rows = b * C
        key = ((rows % 8 == 0) or (rows == N * C),   # (8,128) tiling rule
               (N // b) >= 2,                        # keep both v7x TCs busy
               b)                                    # amortize per-step overhead
        if best_key is None or key > best_key:
            best, best_key = b, key
    return best


def dilated_residual_block(x, w0, b0, w1, b1, dilation, *,
                           mxu_dtype=jnp.float32):
    """x: (N, C, H, W); w*: (C, C, 3, 3) PyTorch OIHW; b*: (C,).

    Pass mxu_dtype=jnp.bfloat16 on v6e/v7x for ~2x MXU rate (matmul operands
    only; accumulation and all elementwise math stay f32).
    """
    N, C, H, W = x.shape
    d = int(dilation)
    L = H * W
    P = d * W + d
    lead = -(-P // 128) * 128          # interior starts lane-aligned

    # Batch folded into sublanes: dense I/O tiles even for small C (free reshape).
    x2 = x.reshape(N * C, L)
    w0g = _group_weights(w0, C, mxu_dtype)
    w1g = _group_weights(w1, C, mxu_dtype)
    b0r = b0.reshape(C, 1).astype(jnp.float32)
    b1r = b1.reshape(C, 1).astype(jnp.float32)

    itemsize = x.dtype.itemsize
    B_blk = _pick_b_blk(N, C, L, itemsize, block_budget_bytes=8 << 20)
    rows = B_blk * C
    if rows % 8 != 0 and rows != N * C:
        # Fall back to the full-extent row block, which always satisfies the
        # (8,128) BlockSpec tiling rule.
        B_blk, rows = N, N * C

    # VMEM budgeting: double-buffered in/out blocks + (double-buffered) weights
    # + the flat-padded scratch, with headroom for Mosaic-internal scratch.
    scratch_bytes = 3 * C * (lead + L + P) * 4
    weight_bytes = 2 * (2 * int(w0g.size) * w0g.dtype.itemsize + 2 * C * 4)
    need = 4 * rows * L * itemsize + weight_bytes + scratch_bytes
    vmem_limit = int(min(64 << 20, max(need + (4 << 20), 16 << 20)))

    kernel = functools.partial(_block_kernel, C=C, H=H, W=W, d=d,
                               B_blk=B_blk, lead=lead, mxu_dtype=mxu_dtype)
    const3 = lambda n: (0, 0, 0)
    const2 = lambda n: (0, 0)

    out = pl.pallas_call(
        kernel,
        out_shape=jax.ShapeDtypeStruct((N * C, L), x.dtype),
        grid=(N // B_blk,),
        in_specs=[
            pl.BlockSpec((rows, L), lambda n: (n, 0)),
            # NOTE: pl.Buffered(1) single-buffering of these constant-index
            # weight/bias blocks would save a few KiB of VMEM but is skipped
            # to avoid compile risk at negligible benefit for these sizes.
            pl.BlockSpec((3, C, 3 * C), const3),
            pl.BlockSpec((C, 1), const2),
            pl.BlockSpec((3, C, 3 * C), const3),
            pl.BlockSpec((C, 1), const2),
        ],
        out_specs=pl.BlockSpec((rows, L), lambda n: (n, 0)),
        scratch_shapes=[pltpu.VMEM((3 * C, lead + L + P), jnp.float32)],
        compiler_params=pltpu.CompilerParams(
            dimension_semantics=("parallel",),
            vmem_limit_bytes=vmem_limit),
    )(x2, w0g, b0r, w1g, b1r)
    # TODO(synk): for very large C/H/W (v7x 64 MiB VMEM), add H-strip tiling
    # with a d-row halo so the replicated flat-padded scratch stays resident.
    return out.reshape(N, C, H, W)


def _reference(x, w0, b0, w1, b1, d):
    """Pure-JAX reference matching PyTorch Conv2d semantics (high precision)."""
    dn = jax.lax.conv_dimension_numbers(x.shape, w0.shape,
                                        ('NCHW', 'OIHW', 'NCHW'))
    hi = jax.lax.Precision.HIGHEST
    c0 = jax.lax.conv_general_dilated(
        x, w0, window_strides=(1, 1), padding=[(d, d), (d, d)],
        rhs_dilation=(d, d), dimension_numbers=dn,
        precision=hi) + b0[None, :, None, None]
    c0 = jnp.maximum(c0, 0.0)
    c1 = jax.lax.conv_general_dilated(
        c0, w1, window_strides=(1, 1), padding=[(d, d), (d, d)],
        rhs_dilation=(d, d), dimension_numbers=dn,
        precision=hi) + b1[None, :, None, None]
    return x + c1


if __name__ == "__main__":
    N, C, H, W, DIL = 2, 4, 16, 16, 2

    key = jax.random.PRNGKey(0)
    kx, k0, kb0, k1, kb1 = jax.random.split(key, 5)

    x = jax.random.normal(kx, (N, C, H, W), jnp.float32)

    # Deterministic init mimicking nn.Conv2d default (uniform +/- 1/sqrt(fan_in)).
    fan_in = C * 3 * 3
    bound = 1.0 / (fan_in ** 0.5)
    w0 = jax.random.uniform(k0, (C, C, 3, 3), jnp.float32, -bound, bound)
    b0 = jax.random.uniform(kb0, (C,), jnp.float32, -bound, bound)
    w1 = jax.random.uniform(k1, (C, C, 3, 3), jnp.float32, -bound, bound)
    b1 = jax.random.uniform(kb1, (C,), jnp.float32, -bound, bound)

    out = dilated_residual_block(x, w0, b0, w1, b1, DIL)
    out = jax.block_until_ready(out)

    ref = _reference(x, w0, b0, w1, b1, DIL)
    assert out.shape == (N, C, H, W) and out.dtype == x.dtype
    assert jnp.allclose(out, ref, atol=2e-3, rtol=2e-3), "mismatch vs reference"

    print("KERNEL_OK")
</pallas_src>

<mosaic_0001>
module attributes {stable_mosaic.version = 11 : i64} {
  func.func @_block_kernel(%arg0: i32, %arg1: memref<8x256xf32, #tpu.memory_space<vmem>>, %arg2: memref<3x4x12xf32, #tpu.memory_space<vmem>>, %arg3: memref<4x1xf32, #tpu.memory_space<vmem>>, %arg4: memref<3x4x12xf32, #tpu.memory_space<vmem>>, %arg5: memref<4x1xf32, #tpu.memory_space<vmem>>, %arg6: memref<8x256xf32, #tpu.memory_space<vmem>>, %arg7: memref<12x418xf32, #tpu.memory_space<vmem>>) attributes {dimension_semantics = [#tpu.dimension_semantics<parallel>], iteration_bounds = array<i64: 1>, scalar_prefetch = 0 : i64, scratch_operands = 1 : i64, tpu.core_type = #tpu.core_type<tc>, window_params = [{transform_indices = @transform_0, window_bounds = array<i64: 8, 256>}, {pipeline_mode = #tpu.pipeline_mode<synchronous>, transform_indices = @transform_1, window_bounds = array<i64: 3, 4, 12>}, {pipeline_mode = #tpu.pipeline_mode<synchronous>, transform_indices = @transform_2, window_bounds = array<i64: 4, 1>}, {pipeline_mode = #tpu.pipeline_mode<synchronous>, transform_indices = @transform_3, window_bounds = array<i64: 3, 4, 12>}, {pipeline_mode = #tpu.pipeline_mode<synchronous>, transform_indices = @transform_4, window_bounds = array<i64: 4, 1>}, {transform_indices = @transform_5, window_bounds = array<i64: 8, 256>}]} {
    %cst = arith.constant 0.000000e+00 : f32
    %0 = vector.broadcast %cst : f32 to vector<4x34xf32>
    %c0 = arith.constant 0 : index
    %c126 = arith.constant 126 : index
    %1 = vector.load %arg7[%c0, %c126] : memref<12x418xf32, #tpu.memory_space<vmem>>, vector<4x34xf32>
    tpu.vector_store %arg7[%c0, %c126], %0 {strides = array<i32>} : memref<12x418xf32, #tpu.memory_space<vmem>>, vector<4x34xf32>,
    %cst_0 = arith.constant 0.000000e+00 : f32
    %2 = vector.broadcast %cst_0 : f32 to vector<4x2xf32>
    %c4 = arith.constant 4 : index
    %c126_1 = arith.constant 126 : index
    %3 = vector.load %arg7[%c4, %c126_1] : memref<12x418xf32, #tpu.memory_space<vmem>>, vector<4x2xf32>
    tpu.vector_store %arg7[%c4, %c126_1], %2 {strides = array<i32>} : memref<12x418xf32, #tpu.memory_space<vmem>>, vector<4x2xf32>,
    %cst_2 = arith.constant 0.000000e+00 : f32
    %4 = vector.broadcast %cst_2 : f32 to vector<4x2xf32>
    %c4_3 = arith.constant 4 : index
    %c384 = arith.constant 384 : index
    %5 = vector.load %arg7[%c4_3, %c384] : memref<12x418xf32, #tpu.memory_space<vmem>>, vector<4x2xf32>
    tpu.vector_store %arg7[%c4_3, %c384], %4 {strides = array<i32>} : memref<12x418xf32, #tpu.memory_space<vmem>>, vector<4x2xf32>,
    %cst_4 = arith.constant 0.000000e+00 : f32
    %6 = vector.broadcast %cst_4 : f32 to vector<4x34xf32>
    %c8 = arith.constant 8 : index
    %c352 = arith.constant 352 : index
    %7 = vector.load %arg7[%c8, %c352] : memref<12x418xf32, #tpu.memory_space<vmem>>, vector<4x34xf32>
    tpu.vector_store %arg7[%c8, %c352], %6 {strides = array<i32>} : memref<12x418xf32, #tpu.memory_space<vmem>>, vector<4x34xf32>,
    %8 = tpu.iota {dimensions = array<i32: 1>} : vector<1x256xi32>
    %c16_i32 = arith.constant 16 : i32
    %c0_i32 = arith.constant 0 : i32
    %9 = arith.cmpi eq, %c16_i32, %c0_i32 : i32
    %c1_i32 = arith.constant 1 : i32
    %10 = arith.select %9, %c1_i32, %c16_i32 : i32
    %11 = vector.broadcast %10 : i32 to vector<1x256xi32>
    %12 = arith.remsi %8, %11 : vector<1x256xi32>
    %c0_i32_5 = arith.constant 0 : i32
    %13 = vector.broadcast %c0_i32_5 : i32 to vector<1x256xi32>
    %14 = arith.cmpi ne, %12, %13 : vector<1x256xi32>
    %c0_i32_6 = arith.constant 0 : i32
    %15 = vector.broadcast %c0_i32_6 : i32 to vector<1x256xi32>
    %16 = arith.cmpi slt, %12, %15 : vector<1x256xi32>
    %c0_i32_7 = arith.constant 0 : i32
    %17 = arith.cmpi slt, %10, %c0_i32_7 : i32
    %18 = vector.broadcast %17 : i1 to vector<1x256xi1>
    %19 = vector.broadcast %18 : vector<1x256xi1> to vector<1x256xi1>
    %20 = arith.xori %16, %19 : vector<1x256xi1>
    %21 = arith.andi %20, %14 : vector<1x256xi1>
    %22 = vector.broadcast %10 : i32 to vector<1x256xi32>
    %23 = arith.addi %12, %22 : vector<1x256xi32>
    %24 = arith.select %21, %23, %12 : vector<1x256xi1>, vector<1x256xi32>
    %c2_i32 = arith.constant 2 : i32
    %25 = vector.broadcast %c2_i32 : i32 to vector<1x256xi32>
    %26 = arith.cmpi sge, %24, %25 : vector<1x256xi32>
    %27 = arith.extui %26 : vector<1x256xi1> to vector<1x256xi32>
    %28 = arith.sitofp %27 : vector<1x256xi32> to vector<1x256xf32>
    %c14_i32 = arith.constant 14 : i32
    %29 = vector.broadcast %c14_i32 : i32 to vector<1x256xi32>
    %30 = arith.cmpi slt, %24, %29 : vector<1x256xi32>
    %31 = arith.extui %30 : vector<1x256xi1> to vector<1x256xi32>
    %32 = arith.sitofp %31 : vector<1x256xi32> to vector<1x256xf32>
    %c0_8 = arith.constant 0 : index
    %c0_9 = arith.constant 0 : index
    %33 = vector.load %arg3[%c0_8, %c0_9] : memref<4x1xf32, #tpu.memory_space<vmem>>, vector<4x1xf32>
    %34 = vector.shape_cast %33 : vector<4x1xf32> to vector<4x1xf32>
    %35 = vector.broadcast %34 : vector<4x1xf32> to vector<4x256xf32>
    %c0_10 = arith.constant 0 : index
    %c0_11 = arith.constant 0 : index
    %36 = vector.load %arg5[%c0_10, %c0_11] : memref<4x1xf32, #tpu.memory_space<vmem>>, vector<4x1xf32>
    %37 = vector.shape_cast %36 : vector<4x1xf32> to vector<4x1xf32>
    %38 = vector.broadcast %37 : vector<4x1xf32> to vector<4x256xf32>
    %c0_12 = arith.constant 0 : index
    %c0_13 = arith.constant 0 : index
    %39 = vector.load %arg1[%c0_12, %c0_13] : memref<8x256xf32, #tpu.memory_space<vmem>>, vector<4x256xf32>
    %c0_14 = arith.constant 0 : index
    %c160 = arith.constant 160 : index
    %40 = vector.load %arg7[%c0_14, %c160] : memref<12x418xf32, #tpu.memory_space<vmem>>, vector<4x256xf32>
    tpu.vector_store %arg7[%c0_14, %c160], %39 {strides = array<i32>} : memref<12x418xf32, #tpu.memory_space<vmem>>, vector<4x256xf32>,
    %c4_15 = arith.constant 4 : index
    %c128 = arith.constant 128 : index
    %41 = vector.load %arg7[%c4_15, %c128] : memref<12x418xf32, #tpu.memory_space<vmem>>, vector<4x256xf32>
    tpu.vector_store %arg7[%c4_15, %c128], %39 {strides = array<i32>} : memref<12x418xf32, #tpu.memory_space<vmem>>, vector<4x256xf32>,
    %c8_16 = arith.constant 8 : index
    %c96 = arith.constant 96 : index
    %42 = vector.load %arg7[%c8_16, %c96] : memref<12x418xf32, #tpu.memory_space<vmem>>, vector<4x256xf32>
    tpu.vector_store %arg7[%c8_16, %c96], %39 {strides = array<i32>} : memref<12x418xf32, #tpu.memory_space<vmem>>, vector<4x256xf32>,
    %c0_17 = arith.constant 0 : index
    %c126_18 = arith.constant 126 : index
    %43 = vector.load %arg7[%c0_17, %c126_18] : memref<12x418xf32, #tpu.memory_space<vmem>>, vector<12x256xf32>
    %c0_19 = arith.constant 0 : index
    %c0_20 = arith.constant 0 : index
    %c0_21 = arith.constant 0 : index
    %44 = vector.load %arg2[%c0_19, %c0_20, %c0_21] : memref<3x4x12xf32, #tpu.memory_space<vmem>>, vector<1x4x12xf32>
    %45 = vector.shape_cast %44 : vector<1x4x12xf32> to vector<4x12xf32>
    %cst_22 = arith.constant dense<0.000000e+00> : vector<4x256xf32>
    %46 = tpu.matmul %45, %43, %cst_22 {dimension_numbers = #tpu.dot_dimension_numbers<[1], [0], [0], [1], [0, 0, 1, 1], [], []>} : vector<4x12xf32>, vector<12x256xf32>, vector<4x256xf32> -> vector<4x256xf32>
    %47 = vector.broadcast %28 : vector<1x256xf32> to vector<4x256xf32>
    %48 = arith.mulf %46, %47 : vector<4x256xf32>
    %49 = arith.addf %35, %48 : vector<4x256xf32>
    %c0_23 = arith.constant 0 : index
    %c128_24 = arith.constant 128 : index
    %50 = vector.load %arg7[%c0_23, %c128_24] : memref<12x418xf32, #tpu.memory_space<vmem>>, vector<12x256xf32>
    %c1 = arith.constant 1 : index
    %c0_25 = arith.constant 0 : index
    %c0_26 = arith.constant 0 : index
    %51 = vector.load %arg2[%c1, %c0_25, %c0_26] : memref<3x4x12xf32, #tpu.memory_space<vmem>>, vector<1x4x12xf32>
    %52 = vector.shape_cast %51 : vector<1x4x12xf32> to vector<4x12xf32>
    %cst_27 = arith.constant dense<0.000000e+00> : vector<4x256xf32>
    %53 = tpu.matmul %52, %50, %cst_27 {dimension_numbers = #tpu.dot_dimension_numbers<[1], [0], [0], [1], [0, 0, 1, 1], [], []>} : vector<4x12xf32>, vector<12x256xf32>, vector<4x256xf32> -> vector<4x256xf32>
    %54 = arith.addf %49, %53 : vector<4x256xf32>
    %c0_28 = arith.constant 0 : index
    %c130 = arith.constant 130 : index
    %55 = vector.load %arg7[%c0_28, %c130] : memref<12x418xf32, #tpu.memory_space<vmem>>, vector<12x256xf32>
    %c2 = arith.constant 2 : index
    %c0_29 = arith.constant 0 : index
    %c0_30 = arith.constant 0 : index
    %56 = vector.load %arg2[%c2, %c0_29, %c0_30] : memref<3x4x12xf32, #tpu.memory_space<vmem>>, vector<1x4x12xf32>
    %57 = vector.shape_cast %56 : vector<1x4x12xf32> to vector<4x12xf32>
    %cst_31 = arith.constant dense<0.000000e+00> : vector<4x256xf32>
    %58 = tpu.matmul %57, %55, %cst_31 {dimension_numbers = #tpu.dot_dimension_numbers<[1], [0], [0], [1], [0, 0, 1, 1], [], []>} : vector<4x12xf32>, vector<12x256xf32>, vector<4x256xf32> -> vector<4x256xf32>
    %59 = vector.broadcast %32 : vector<1x256xf32> to vector<4x256xf32>
    %60 = arith.mulf %58, %59 : vector<4x256xf32>
    %61 = arith.addf %54, %60 : vector<4x256xf32>
    %cst_32 = arith.constant 0.000000e+00 : f32
    %62 = vector.broadcast %cst_32 : f32 to vector<4x256xf32>
    %63 = arith.maximumf %61, %62 : vector<4x256xf32>
    %c0_33 = arith.constant 0 : index
    %c160_34 = arith.constant 160 : index
    %64 = vector.load %arg7[%c0_33, %c160_34] : memref<12x418xf32, #tpu.memory_space<vmem>>, vector<4x256xf32>
    tpu.vector_store %arg7[%c0_33, %c160_34], %63 {strides = array<i32>} : memref<12x418xf32, #tpu.memory_space<vmem>>, vector<4x256xf32>,
    %c4_35 = arith.constant 4 : index
    %c128_36 = arith.constant 128 : index
    %65 = vector.load %arg7[%c4_35, %c128_36] : memref<12x418xf32, #tpu.memory_space<vmem>>, vector<4x256xf32>
    tpu.vector_store %arg7[%c4_35, %c128_36], %63 {strides = array<i32>} : memref<12x418xf32, #tpu.memory_space<vmem>>, vector<4x256xf32>,
    %c8_37 = arith.constant 8 : index
    %c96_38 = arith.constant 96 : index
    %66 = vector.load %arg7[%c8_37, %c96_38] : memref<12x418xf32, #tpu.memory_space<vmem>>, vector<4x256xf32>
    tpu.vector_store %arg7[%c8_37, %c96_38], %63 {strides = array<i32>} : memref<12x418xf32, #tpu.memory_space<vmem>>, vector<4x256xf32>,
    %c0_39 = arith.constant 0 : index
    %c0_40 = arith.constant 0 : index
    %67 = vector.load %arg1[%c0_39, %c0_40] : memref<8x256xf32, #tpu.memory_space<vmem>>, vector<4x256xf32>
    %c0_41 = arith.constant 0 : index
    %c126_42 = arith.constant 126 : index
    %68 = vector.load %arg7[%c0_41, %c126_42] : memref<12x418xf32, #tpu.memory_space<vmem>>, vector<12x256xf32>
    %c0_43 = arith.constant 0 : index
    %c0_44 = arith.constant 0 : index
    %c0_45 = arith.constant 0 : index
    %69 = vector.load %arg4[%c0_43, %c0_44, %c0_45] : memref<3x4x12xf32, #tpu.memory_space<vmem>>, vector<1x4x12xf32>
    %70 = vector.shape_cast %69 : vector<1x4x12xf32> to vector<4x12xf32>
    %cst_46 = arith.constant dense<0.000000e+00> : vector<4x256xf32>
    %71 = tpu.matmul %70, %68, %cst_46 {dimension_numbers = #tpu.dot_dimension_numbers<[1], [0], [0], [1], [0, 0, 1, 1], [], []>} : vector<4x12xf32>, vector<12x256xf32>, vector<4x256xf32> -> vector<4x256xf32>
    %72 = vector.broadcast %28 : vector<1x256xf32> to vector<4x256xf32>
    %73 = arith.mulf %71, %72 : vector<4x256xf32>
    %74 = arith.addf %38, %73 : vector<4x256xf32>
    %c0_47 = arith.constant 0 : index
    %c128_48 = arith.constant 128 : index
    %75 = vector.load %arg7[%c0_47, %c128_48] : memref<12x418xf32, #tpu.memory_space<vmem>>, vector<12x256xf32>
    %c1_49 = arith.constant 1 : index
    %c0_50 = arith.constant 0 : index
    %c0_51 = arith.constant 0 : index
    %76 = vector.load %arg4[%c1_49, %c0_50, %c0_51] : memref<3x4x12xf32, #tpu.memory_space<vmem>>, vector<1x4x12xf32>
    %77 = vector.shape_cast %76 : vector<1x4x12xf32> to vector<4x12xf32>
    %cst_52 = arith.constant dense<0.000000e+00> : vector<4x256xf32>
    %78 = tpu.matmul %77, %75, %cst_52 {dimension_numbers = #tpu.dot_dimension_numbers<[1], [0], [0], [1], [0, 0, 1, 1], [], []>} : vector<4x12xf32>, vector<12x256xf32>, vector<4x256xf32> -> vector<4x256xf32>
    %79 = arith.addf %74, %78 : vector<4x256xf32>
    %c0_53 = arith.constant 0 : index
    %c130_54 = arith.constant 130 : index
    %80 = vector.load %arg7[%c0_53, %c130_54] : memref<12x418xf32, #tpu.memory_space<vmem>>, vector<12x256xf32>
    %c2_55 = arith.constant 2 : index
    %c0_56 = arith.constant 0 : index
    %c0_57 = arith.constant 0 : index
    %81 = vector.load %arg4[%c2_55, %c0_56, %c0_57] : memref<3x4x12xf32, #tpu.memory_space<vmem>>, vector<1x4x12xf32>
    %82 = vector.shape_cast %81 : vector<1x4x12xf32> to vector<4x12xf32>
    %cst_58 = arith.constant dense<0.000000e+00> : vector<4x256xf32>
    %83 = tpu.matmul %82, %80, %cst_58 {dimension_numbers = #tpu.dot_dimension_numbers<[1], [0], [0], [1], [0, 0, 1, 1], [], []>} : vector<4x12xf32>, vector<12x256xf32>, vector<4x256xf32> -> vector<4x256xf32>
    %84 = vector.broadcast %32 : vector<1x256xf32> to vector<4x256xf32>
    %85 = arith.mulf %83, %84 : vector<4x256xf32>
    %86 = arith.addf %79, %85 : vector<4x256xf32>
    %87 = arith.addf %67, %86 : vector<4x256xf32>
    %c0_59 = arith.constant 0 : index
    %c0_60 = arith.constant 0 : index
    %88 = vector.load %arg6[%c0_59, %c0_60] : memref<8x256xf32, #tpu.memory_space<vmem>>, vector<4x256xf32>
    tpu.vector_store %arg6[%c0_59, %c0_60], %87 {strides = array<i32>} : memref<8x256xf32, #tpu.memory_space<vmem>>, vector<4x256xf32>,
    %c4_61 = arith.constant 4 : index
    %c0_62 = arith.constant 0 : index
    %89 = vector.load %arg1[%c4_61, %c0_62] : memref<8x256xf32, #tpu.memory_space<vmem>>, vector<4x256xf32>
    %c0_63 = arith.constant 0 : index
    %c160_64 = arith.constant 160 : index
    %90 = vector.load %arg7[%c0_63, %c160_64] : memref<12x418xf32, #tpu.memory_space<vmem>>, vector<4x256xf32>
    tpu.vector_store %arg7[%c0_63, %c160_64], %89 {strides = array<i32>} : memref<12x418xf32, #tpu.memory_space<vmem>>, vector<4x256xf32>,
    %c4_65 = arith.constant 4 : index
    %c128_66 = arith.constant 128 : index
    %91 = vector.load %arg7[%c4_65, %c128_66] : memref<12x418xf32, #tpu.memory_space<vmem>>, vector<4x256xf32>
    tpu.vector_store %arg7[%c4_65, %c128_66], %89 {strides = array<i32>} : memref<12x418xf32, #tpu.memory_space<vmem>>, vector<4x256xf32>,
    %c8_67 = arith.constant 8 : index
    %c96_68 = arith.constant 96 : index
    %92 = vector.load %arg7[%c8_67, %c96_68] : memref<12x418xf32, #tpu.memory_space<vmem>>, vector<4x256xf32>
    tpu.vector_store %arg7[%c8_67, %c96_68], %89 {strides = array<i32>} : memref<12x418xf32, #tpu.memory_space<vmem>>, vector<4x256xf32>,
    %c0_69 = arith.constant 0 : index
    %c126_70 = arith.constant 126 : index
    %93 = vector.load %arg7[%c0_69, %c126_70] : memref<12x418xf32, #tpu.memory_space<vmem>>, vector<12x256xf32>
    %c0_71 = arith.constant 0 : index
    %c0_72 = arith.constant 0 : index
    %c0_73 = arith.constant 0 : index
    %94 = vector.load %arg2[%c0_71, %c0_72, %c0_73] : memref<3x4x12xf32, #tpu.memory_space<vmem>>, vector<1x4x12xf32>
    %95 = vector.shape_cast %94 : vector<1x4x12xf32> to vector<4x12xf32>
    %cst_74 = arith.constant dense<0.000000e+00> : vector<4x256xf32>
    %96 = tpu.matmul %95, %93, %cst_74 {dimension_numbers = #tpu.dot_dimension_numbers<[1], [0], [0], [1], [0, 0, 1, 1], [], []>} : vector<4x12xf32>, vector<12x256xf32>, vector<4x256xf32> -> vector<4x256xf32>
    %97 = vector.broadcast %28 : vector<1x256xf32> to vector<4x256xf32>
    %98 = arith.mulf %96, %97 : vector<4x256xf32>
    %99 = arith.addf %35, %98 : vector<4x256xf32>
    %c0_75 = arith.constant 0 : index
    %c128_76 = arith.constant 128 : index
    %100 = vector.load %arg7[%c0_75, %c128_76] : memref<12x418xf32, #tpu.memory_space<vmem>>, vector<12x256xf32>
    %c1_77 = arith.constant 1 : index
    %c0_78 = arith.constant 0 : index
    %c0_79 = arith.constant 0 : index
    %101 = vector.load %arg2[%c1_77, %c0_78, %c0_79] : memref<3x4x12xf32, #tpu.memory_space<vmem>>, vector<1x4x12xf32>
    %102 = vector.shape_cast %101 : vector<1x4x12xf32> to vector<4x12xf32>
    %cst_80 = arith.constant dense<0.000000e+00> : vector<4x256xf32>
    %103 = tpu.matmul %102, %100, %cst_80 {dimension_numbers = #tpu.dot_dimension_numbers<[1], [0], [0], [1], [0, 0, 1, 1], [], []>} : vector<4x12xf32>, vector<12x256xf32>, vector<4x256xf32> -> vector<4x256xf32>
    %104 = arith.addf %99, %103 : vector<4x256xf32>
    %c0_81 = arith.constant 0 : index
    %c130_82 = arith.constant 130 : index
    %105 = vector.load %arg7[%c0_81, %c130_82] : memref<12x418xf32, #tpu.memory_space<vmem>>, vector<12x256xf32>
    %c2_83 = arith.constant 2 : index
    %c0_84 = arith.constant 0 : index
    %c0_85 = arith.constant 0 : index
    %106 = vector.load %arg2[%c2_83, %c0_84, %c0_85] : memref<3x4x12xf32, #tpu.memory_space<vmem>>, vector<1x4x12xf32>
    %107 = vector.shape_cast %106 : vector<1x4x12xf32> to vector<4x12xf32>
    %cst_86 = arith.constant dense<0.000000e+00> : vector<4x256xf32>
    %108 = tpu.matmul %107, %105, %cst_86 {dimension_numbers = #tpu.dot_dimension_numbers<[1], [0], [0], [1], [0, 0, 1, 1], [], []>} : vector<4x12xf32>, vector<12x256xf32>, vector<4x256xf32> -> vector<4x256xf32>
    %109 = vector.broadcast %32 : vector<1x256xf32> to vector<4x256xf32>
    %110 = arith.mulf %108, %109 : vector<4x256xf32>
    %111 = arith.addf %104, %110 : vector<4x256xf32>
    %cst_87 = arith.constant 0.000000e+00 : f32
    %112 = vector.broadcast %cst_87 : f32 to vector<4x256xf32>
    %113 = arith.maximumf %111, %112 : vector<4x256xf32>
    %c0_88 = arith.constant 0 : index
    %c160_89 = arith.constant 160 : index
    %114 = vector.load %arg7[%c0_88, %c160_89] : memref<12x418xf32, #tpu.memory_space<vmem>>, vector<4x256xf32>
    tpu.vector_store %arg7[%c0_88, %c160_89], %113 {strides = array<i32>} : memref<12x418xf32, #tpu.memory_space<vmem>>, vector<4x256xf32>,
    %c4_90 = arith.constant 4 : index
    %c128_91 = arith.constant 128 : index
    %115 = vector.load %arg7[%c4_90, %c128_91] : memref<12x418xf32, #tpu.memory_space<vmem>>, vector<4x256xf32>
    tpu.vector_store %arg7[%c4_90, %c128_91], %113 {strides = array<i32>} : memref<12x418xf32, #tpu.memory_space<vmem>>, vector<4x256xf32>,
    %c8_92 = arith.constant 8 : index
    %c96_93 = arith.constant 96 : index
    %116 = vector.load %arg7[%c8_92, %c96_93] : memref<12x418xf32, #tpu.memory_space<vmem>>, vector<4x256xf32>
    tpu.vector_store %arg7[%c8_92, %c96_93], %113 {strides = array<i32>} : memref<12x418xf32, #tpu.memory_space<vmem>>, vector<4x256xf32>,
    %c4_94 = arith.constant 4 : index
    %c0_95 = arith.constant 0 : index
    %117 = vector.load %arg1[%c4_94, %c0_95] : memref<8x256xf32, #tpu.memory_space<vmem>>, vector<4x256xf32>
    %c0_96 = arith.constant 0 : index
    %c126_97 = arith.constant 126 : index
    %118 = vector.load %arg7[%c0_96, %c126_97] : memref<12x418xf32, #tpu.memory_space<vmem>>, vector<12x256xf32>
    %c0_98 = arith.constant 0 : index
    %c0_99 = arith.constant 0 : index
    %c0_100 = arith.constant 0 : index
    %119 = vector.load %arg4[%c0_98, %c0_99, %c0_100] : memref<3x4x12xf32, #tpu.memory_space<vmem>>, vector<1x4x12xf32>
    %120 = vector.shape_cast %119 : vector<1x4x12xf32> to vector<4x12xf32>
    %cst_101 = arith.constant dense<0.000000e+00> : vector<4x256xf32>
    %121 = tpu.matmul %120, %118, %cst_101 {dimension_numbers = #tpu.dot_dimension_numbers<[1], [0], [0], [1], [0, 0, 1, 1], [], []>} : vector<4x12xf32>, vector<12x256xf32>, vector<4x256xf32> -> vector<4x256xf32>
    %122 = vector.broadcast %28 : vector<1x256xf32> to vector<4x256xf32>
    %123 = arith.mulf %121, %122 : vector<4x256xf32>
    %124 = arith.addf %38, %123 : vector<4x256xf32>
    %c0_102 = arith.constant 0 : index
    %c128_103 = arith.constant 128 : index
    %125 = vector.load %arg7[%c0_102, %c128_103] : memref<12x418xf32, #tpu.memory_space<vmem>>, vector<12x256xf32>
    %c1_104 = arith.constant 1 : index
    %c0_105 = arith.constant 0 : index
    %c0_106 = arith.constant 0 : index
    %126 = vector.load %arg4[%c1_104, %c0_105, %c0_106] : memref<3x4x12xf32, #tpu.memory_space<vmem>>, vector<1x4x12xf32>
    %127 = vector.shape_cast %126 : vector<1x4x12xf32> to vector<4x12xf32>
    %cst_107 = arith.constant dense<0.000000e+00> : vector<4x256xf32>
    %128 = tpu.matmul %127, %125, %cst_107 {dimension_numbers = #tpu.dot_dimension_numbers<[1], [0], [0], [1], [0, 0, 1, 1], [], []>} : vector<4x12xf32>, vector<12x256xf32>, vector<4x256xf32> -> vector<4x256xf32>
    %129 = arith.addf %124, %128 : vector<4x256xf32>
    %c0_108 = arith.constant 0 : index
    %c130_109 = arith.constant 130 : index
    %130 = vector.load %arg7[%c0_108, %c130_109] : memref<12x418xf32, #tpu.memory_space<vmem>>, vector<12x256xf32>
    %c2_110 = arith.constant 2 : index
    %c0_111 = arith.constant 0 : index
    %c0_112 = arith.constant 0 : index
    %131 = vector.load %arg4[%c2_110, %c0_111, %c0_112] : memref<3x4x12xf32, #tpu.memory_space<vmem>>, vector<1x4x12xf32>
    %132 = vector.shape_cast %131 : vector<1x4x12xf32> to vector<4x12xf32>
    %cst_113 = arith.constant dense<0.000000e+00> : vector<4x256xf32>
    %133 = tpu.matmul %132, %130, %cst_113 {dimension_numbers = #tpu.dot_dimension_numbers<[1], [0], [0], [1], [0, 0, 1, 1], [], []>} : vector<4x12xf32>, vector<12x256xf32>, vector<4x256xf32> -> vector<4x256xf32>
    %134 = vector.broadcast %32 : vector<1x256xf32> to vector<4x256xf32>
    %135 = arith.mulf %133, %134 : vector<4x256xf32>
    %136 = arith.addf %129, %135 : vector<4x256xf32>
    %137 = arith.addf %117, %136 : vector<4x256xf32>
    %c4_114 = arith.constant 4 : index
    %c0_115 = arith.constant 0 : index
    %138 = vector.load %arg6[%c4_114, %c0_115] : memref<8x256xf32, #tpu.memory_space<vmem>>, vector<4x256xf32>
    tpu.vector_store %arg6[%c4_114, %c0_115], %137 {strides = array<i32>} : memref<8x256xf32, #tpu.memory_space<vmem>>, vector<4x256xf32>,
    return
  }
  func.func @transform_0(%arg0: i32) -> (i32, i32) {
    %c0_i32 = arith.constant 0 : i32
    %c0_i32_0 = arith.constant 0 : i32
    return %arg0, %c0_i32 : i32, i32
  }
  func.func @transform_1(%arg0: i32) -> (i32, i32, i32) {
    %c0_i32 = arith.constant 0 : i32
    %c0_i32_0 = arith.constant 0 : i32
    %c0_i32_1 = arith.constant 0 : i32
    %c0_i32_2 = arith.constant 0 : i32
    return %c0_i32, %c0_i32_0, %c0_i32_1 : i32, i32, i32
  }
  func.func @transform_2(%arg0: i32) -> (i32, i32) {
    %c0_i32 = arith.constant 0 : i32
    %c0_i32_0 = arith.constant 0 : i32
    %c0_i32_1 = arith.constant 0 : i32
    return %c0_i32, %c0_i32_0 : i32, i32
  }
  func.func @transform_3(%arg0: i32) -> (i32, i32, i32) {
    %c0_i32 = arith.constant 0 : i32
    %c0_i32_0 = arith.constant 0 : i32
    %c0_i32_1 = arith.constant 0 : i32
    %c0_i32_2 = arith.constant 0 : i32
    return %c0_i32, %c0_i32_0, %c0_i32_1 : i32, i32, i32
  }
  func.func @transform_4(%arg0: i32) -> (i32, i32) {
    %c0_i32 = arith.constant 0 : i32
    %c0_i32_0 = arith.constant 0 : i32
    %c0_i32_1 = arith.constant 0 : i32
    return %c0_i32, %c0_i32_0 : i32, i32
  }
  func.func @transform_5(%arg0: i32) -> (i32, i32) {
    %c0_i32 = arith.constant 0 : i32
    %c0_i32_0 = arith.constant 0 : i32
    return %arg0, %c0_i32 : i32, i32
  }
}

</mosaic_0001>

<llo_original>
// kernel: tpu_custom_call.1
$region0: #{tpu_custom_call.1}
  #allocation0 [shape = 'u32[]', space=smem, size = 0x4, offset = 0x4, fixed_abs, tag = 'smem constant byte address 0x4 - core index']
  #allocation1 [shape = 'u32[72,128]{1,0:T(1,128)}', space=vmem, size = 0x9000, scoped, tag = 'internal scratch']
  #allocation2 [shape = 'f32[12,418]{1,0:T(8,128)}', space=vmem, size = 0x8000, scoped, tag = 'scratch operand']
  %s0 = inlined_call_operand.hbm [shape: f32[8,256], index: 0, kind: input, shape index: {}]
  %s1 = inlined_call_operand.hbm [shape: f32[3,4,12], index: 1, kind: input, shape index: {}]
  %s2 = inlined_call_operand.vmem [shape: f32[4,1], index: 2, kind: input, shape index: {}]
  %s3 = inlined_call_operand.hbm [shape: f32[3,4,12], index: 3, kind: input, shape index: {}]
  %s4 = inlined_call_operand.vmem [shape: f32[4,1], index: 4, kind: input, shape index: {}]
  %s5 = inlined_call_operand.hbm [shape: f32[8,256], index: 5, kind: output, shape index: {}]
  %s6 = sld [smem:[#allocation0]]
  $region42: #{tpu_custom_call.1} parent=0
    _
  %s8 = ssub.s32 1, %s6
  %s9 = scalar_select 0, %s8, %s6
  $region1: #{tpu_custom_call.1} parent=0
    #allocation3 [shape = 'u8[8192]{0}', space=vmem, size = 0x2000, scoped, tag = 'input window, operand 0, single buffered']
    #allocation4 [shape = 's32[1]{0}', space=sflag, size = 0x4, scoped, tag = 'scoped memory for tpu_custom_call.1']
    #allocation5 [shape = 's32[1]{0}', space=sflag, size = 0x4, scoped, tag = 'scoped memory for tpu_custom_call.1']
    #allocation6 [shape = 'u8[6144]{0}', space=vmem, size = 0x1800, scoped, tag = 'input window, operand 1, single buffered']
    #allocation7 [shape = 's32[1]{0}', space=sflag, size = 0x4, scoped, tag = 'scoped memory for tpu_custom_call.1']
    #allocation8 [shape = 'u8[6144]{0}', space=vmem, size = 0x1800, scoped, tag = 'input window, operand 3, single buffered']
    #allocation9 [shape = 'u8[8192]{0}', space=vmem, size = 0x2000, scoped, tag = 'output window, operand 0, single buffered']
    %10 = vsyncpa [#allocation4], 0
    %11 = vsyncpa [#allocation7], 0
    %12 = vsyncpa [#allocation5], 0
    // Predicated region
    $region2: #{tpu_custom_call.1} parent=1 // pred_check
      _
    $region3: #{tpu_custom_call.1} parent=1 // pred_check_branch
      %14 = sbr.rel (0) target = $region5
    $region4: #{tpu_custom_call.1} parent=1 // pred_region
      %16 = vsyncadd [#allocation4], 0
      %s18 = sshll.u32 %s0, 4
      %s19 = int_to_ptr.hbm [resolvable:$true] %s18
      %s20 = sshll.u32 [#allocation3], 4
      %s21 = int_to_ptr.vmem [resolvable:$true] %s20
      %23 = dma.hbm_to_vmem [thread:$0]  %s19, 256, %s21, [#allocation4]
    $region5: #{tpu_custom_call.1} parent=1 // pred_fallthru
      _
    // Predicated region
    $region6: #{tpu_custom_call.1} parent=1 // pred_check
      _
    $region7: #{tpu_custom_call.1} parent=1 // pred_check_branch
      %25 = sbr.rel (0) target = $region9
    $region8: #{tpu_custom_call.1} parent=1 // pred_region
      %27 = vsyncadd [#allocation7], 0
      %s28 = sshll.u32 %s1, 4
      %s29 = int_to_ptr.hbm [resolvable:$true] %s28
      %s30 = sshll.u32 [#allocation6], 4
      %s31 = int_to_ptr.vmem [resolvable:$true] %s30
      %36 = dma.hbm_to_vmem [thread:$0]  %s29, 192, %s31, [#allocation7], 64, 64, 4
    $region9: #{tpu_custom_call.1} parent=1 // pred_fallthru
      _
    // Predicated region
    $region10: #{tpu_custom_call.1} parent=1 // pred_check
      _
    $region11: #{tpu_custom_call.1} parent=1 // pred_check_branch
      %38 = sbr.rel (0) target = $region13
    $region12: #{tpu_custom_call.1} parent=1 // pred_region
      _
    $region13: #{tpu_custom_call.1} parent=1 // pred_fallthru
      _
    // Predicated region
    $region14: #{tpu_custom_call.1} parent=1 // pred_check
      _
    $region15: #{tpu_custom_call.1} parent=1 // pred_check_branch
      %40 = sbr.rel (0) target = $region17
    $region16: #{tpu_custom_call.1} parent=1 // pred_region
      %42 = vsyncadd [#allocation7], 0
      %s43 = sshll.u32 %s3, 4
      %s44 = int_to_ptr.hbm [resolvable:$true] %s43
      %s45 = sshll.u32 [#allocation8], 4
      %s46 = int_to_ptr.vmem [resolvable:$true] %s45
      %51 = dma.hbm_to_vmem [thread:$0]  %s44, 192, %s46, [#allocation7], 64, 64, 4
    $region17: #{tpu_custom_call.1} parent=1 // pred_fallthru
      _
    // Predicated region
    $region18: #{tpu_custom_call.1} parent=1 // pred_check
      _
    $region19: #{tpu_custom_call.1} parent=1 // pred_check_branch
      %53 = sbr.rel (0) target = $region21
    $region20: #{tpu_custom_call.1} parent=1 // pred_region
      _
    $region21: #{tpu_custom_call.1} parent=1 // pred_fallthru
      _
    // Predicated region
    $region22: #{tpu_custom_call.1} parent=1 // pred_check
      _
    $region23: #{tpu_custom_call.1} parent=1 // pred_check_branch
      %55 = sbr.rel (0) target = $region25
    $region24: #{tpu_custom_call.1} parent=1 // pred_region
      %57 = dma.done [#allocation4], 256
    $region25: #{tpu_custom_call.1} parent=1 // pred_fallthru
      _
    // Predicated region
    $region26: #{tpu_custom_call.1} parent=1 // pred_check
      _
    $region27: #{tpu_custom_call.1} parent=1 // pred_check_branch
      %59 = sbr.rel (0) target = $region29
    $region28: #{tpu_custom_call.1} parent=1 // pred_region
      %61 = dma.done [#allocation7], 192
    $region29: #{tpu_custom_call.1} parent=1 // pred_fallthru
      _
    // Predicated region
    $region30: #{tpu_custom_call.1} parent=1 // pred_check
      _
    $region31: #{tpu_custom_call.1} parent=1 // pred_check_branch
      %63 = sbr.rel (0) target = $region33
    $region32: #{tpu_custom_call.1} parent=1 // pred_region
      %65 = dma.done [#allocation7], 192
    $region33: #{tpu_custom_call.1} parent=1 // pred_fallthru
      _
    %vm66 = vcmask 1044464
    %67 = vst.msk [vmem:[#allocation2] sm:$0xf] %vm66, 0.0
    %vm68 = vcmask 257024
    %69 = vst.msk [vmem:[#allocation2 + $0x8] sm:$0xf] %vm68, 0.0
    %vm70 = vcmask 1048564
    %71 = vst.msk [vmem:[#allocation2] sm:$0xf0] %vm70, 0.0
    %vm72 = vcmask 15364
    %73 = vst.msk [vmem:[#allocation2 + $0x18] sm:$0xf0] %vm72, 0.0
    %vm74 = vcmask 1044224
    %75 = vst.msk [vmem:[#allocation2 + $0x30] sm:$0xf] %vm74, 0.0
    %vm76 = vcmask 11264
    %77 = vst.msk [vmem:[#allocation2 + $0x38] sm:$0xf] %vm76, 0.0
    %v78 = vlaneseq
    %v79 = vand.u32 %v78, 127
    %v80 = vadd.s32 %v79, 128
    %vm81 = vcmp.lt.s32.totalorder %v79, 0
    %v82 = vsub.s32 0, %v79
    %v83 = vsel %vm81, %v82, %v79
    %v84 = vshrl.u32 %v83, 4
    %v85 = vand.u32 %v83, 15
    %v86 = vsub.s32 0, %v85
    %v87 = vsel %vm81, %v86, %v85
    %vm88 = vcmp.lt.s32.totalorder %v80, 0
    %v89 = vsub.s32 0, %v80
    %v90 = vsel %vm88, %v89, %v80
    %v91 = vshrl.u32 %v90, 4
    %v92 = vand.u32 %v90, 15
    %v93 = vsub.s32 0, %v92
    %v94 = vsel %vm88, %v93, %v92
    %vm95 = vcmp.ne.s32.totalorder %v87, 0
    %vm96 = vcmp.ne.s32.totalorder %v94, 0
    %vm97 = vcmp.lt.s32.totalorder %v87, 0
    %vm98 = vcmp.lt.s32.totalorder %v94, 0
    %vm99 = vmand %vm97, %vm95
    %vm100 = vmand %vm98, %vm96
    %v101 = vadd.s32 %v87, 16
    %v102 = vadd.s32 %v94, 16
    %v103 = vsel %vm99, %v101, %v87
    %v104 = vsel %vm100, %v102, %v94
    %vm105 = vcmp.ge.s32.totalorder %v103, 2
    %vm106 = vcmp.ge.s32.totalorder %v104, 2
    %v107 = vsel %vm105, 1, 0
    %v108 = vsel %vm106, 1, 0
    %v109 = vcvt.s32.f32 %v107
    %v110 = vcvt.s32.f32 %v108
    %vm111 = vcmp.lt.s32.totalorder %v103, 14
    %vm112 = vcmp.lt.s32.totalorder %v104, 14
    %v113 = vsel %vm111, 1, 0
    %v114 = vsel %vm112, 1, 0
    %v115 = vcvt.s32.f32 %v113
    %v116 = vcvt.s32.f32 %v114
    %v117 = vld [vmem:[%s2] sm:$0xf]
    %119 = vset.pattern.permute.xlu0 0
    %120 = vperm.xlu0 %119, %v117
    %v121 = vpop.permute.xlu0 %120
    %v123 = vld [vmem:[%s4] sm:$0xf]
    %125 = vset.pattern.permute.xlu0 0
    %126 = vperm.xlu0 %125, %v123
    %v127 = vpop.permute.xlu0 %126
    %v129 = vld [vmem:[#allocation3] sm:$0xf]
    %v130 = vld [vmem:[#allocation3 + $0x8] sm:$0xf]
    %133 = vrot.lane.b32.xlu0 %v129, 32
    %v134 = vpop.permute.xlu0 %133
    %135 = vrot.lane.b32.xlu0 %v130, 32
    %v136 = vpop.permute.xlu0 %135
    %vm137 = vcmask 261120
    %v138 = vsel %vm137, %v134, %v136
    %vm142 = vcmask 1043712
    %143 = vst.msk [vmem:[#allocation2 + $0x8] sm:$0xf] %vm142, %v134
    %144 = vst [vmem:[#allocation2 + $0x10] sm:$0xf] %v138
    %145 = vst.msk [vmem:[#allocation2 + $0x18] sm:$0xf] %vm68, %v136
    %v146 = vrot.slane %v129, 4
    %v147 = vrot.slane %v130, 4
    %150 = vst [vmem:[#allocation2 + $0x8] sm:$0xf0] %v146
    %151 = vst [vmem:[#allocation2 + $0x10] sm:$0xf0] %v147
    %152 = vrot.lane.b32.xlu0 %v129, 96
    %v153 = vpop.permute.xlu0 %152
    %154 = vrot.lane.b32.xlu0 %v130, 96
    %v155 = vpop.permute.xlu0 %154
    %vm156 = vcmask 785408
    %v157 = vsel %vm156, %v153, %v155
    %161 = vst.msk [vmem:[#allocation2 + $0x20] sm:$0xf] %vm74, %v153
    %162 = vst [vmem:[#allocation2 + $0x28] sm:$0xf] %v157
    %vm163 = vcmask 781312
    %164 = vst.msk [vmem:[#allocation2 + $0x30] sm:$0xf] %vm163, %v155
    %v165 = vld [vmem:[#allocation2] sm:$0xff]
    %v166 = vld [vmem:[#allocation2 + $0x8] sm:$0xff]
    %v167 = vld [vmem:[#allocation2 + $0x10] sm:$0xff]
    %v168 = vld [vmem:[#allocation2 + $0x20] sm:$0xf]
    %v169 = vld [vmem:[#allocation2 + $0x28] sm:$0xf]
    %v170 = vld [vmem:[#allocation2 + $0x30] sm:$0xf]
    %v171 = vld [vmem:[#allocation6] sm:$0xf]
    %178 = vrot.lane.b32.xlu0 %v165, 2
    %v179 = vpop.permute.xlu0 %178
    %180 = vrot.lane.b32.xlu0 %v166, 2
    %v181 = vpop.permute.xlu0 %180
    %182 = vrot.lane.b32.xlu0 %v167, 2
    %v183 = vpop.permute.xlu0 %182
    %184 = vrot.lane.b32.xlu0 %v168, 2
    %v185 = vpop.permute.xlu0 %184
    %186 = vrot.lane.b32.xlu0 %v169, 2
    %v187 = vpop.permute.xlu0 %186
    %188 = vrot.lane.b32.xlu0 %v170, 2
    %v189 = vpop.permute.xlu0 %188
    %vm190 = vcmask 15360
    %v191 = vsel %vm190, %v179, %v181
    %v192 = vsel %vm190, %v181, %v183
    %v193 = vsel %vm190, %v185, %v187
    %v194 = vsel %vm190, %v187, %v189
    %vm197 = vcmask 97280
    %v199 = vsel %vm197, %v171, 0
    %vm201 = vcmask 1043456
    %v202 = vsel %vm201, %v193, 0
    %v204 = vsel %vm201, %v194, 0
    %206 = vmatpush.msra.mxu0 0.0
    %207 = vmatpush.msra.mxu0 0.0
    %208 = vmatpush.msra.mxu0 0.0
    %209 = vmatpush.msra.mxu0 0.0
    %210 = vmatpush.msra.mxu0 0.0
    %211 = vmatpush.msra.mxu0 0.0
    %212 = vmatpush.msra.mxu0 0.0
    %213 = vmatpush.msra.mxu0 0.0
    %214 = vmatpush.msra.mxu0 0.0
    %215 = vmatpush.msra.mxu0 0.0
    %216 = vmatpush.msra.mxu0 0.0
    %217 = vmatpush.msra.mxu0 0.0
    %218 = vmatpush.msra.mxu0 0.0
    %219 = vmatpush.msra.mxu0 0.0
    %220 = vmatpush.msra.mxu0 %v202
    %221 = vmatpush.msra.mxu0 %v191
    %222 = vmatmul.f32.gmra.mxu0 %v199
    %v223 = vpop.f32.mrf.mxu0
    %v224 = vadd.f32 0.0, %v223
    %225 = vdwg.mxu0
    %226 = vmatpush.msra.mxu0 0.0
    %227 = vmatpush.msra.mxu0 0.0
    %228 = vmatpush.msra.mxu0 0.0
    %229 = vmatpush.msra.mxu0 0.0
    %230 = vmatpush.msra.mxu0 0.0
    %231 = vmatpush.msra.mxu0 0.0
    %232 = vmatpush.msra.mxu0 0.0
    %233 = vmatpush.msra.mxu0 0.0
    %234 = vmatpush.msra.mxu0 0.0
    %235 = vmatpush.msra.mxu0 0.0
    %236 = vmatpush.msra.mxu0 0.0
    %237 = vmatpush.msra.mxu0 0.0
    %238 = vmatpush.msra.mxu0 0.0
    %239 = vmatpush.msra.mxu0 0.0
    %240 = vmatpush.msra.mxu0 %v204
    %241 = vmatpush.msra.mxu0 %v192
    %242 = vmatmul.f32.gmra.mxu0 %v199
    %v243 = vpop.f32.mrf.mxu0
    %v244 = vadd.f32 0.0, %v243
    %245 = vdwg.mxu0
    %v246 = vmul.f32 %v224, %v109
    %v247 = vmul.f32 %v244, %v110
    %v248 = vadd.f32 %v121, %v246
    %v249 = vadd.f32 %v121, %v247
    %s250 = scalar_lea.vmem [#allocation6], 4
    %v251 = vld [vmem:[%s250] sm:$0xf]
    %v253 = vsel %vm197, %v251, 0
    %v255 = vsel %vm201, %v169, 0
    %v257 = vsel %vm201, %v170, 0
    %259 = vmatpush.msra.mxu0 0.0
    %260 = vmatpush.msra.mxu0 0.0
    %261 = vmatpush.msra.mxu0 0.0
    %262 = vmatpush.msra.mxu0 0.0
    %263 = vmatpush.msra.mxu0 0.0
    %264 = vmatpush.msra.mxu0 0.0
    %265 = vmatpush.msra.mxu0 0.0
    %266 = vmatpush.msra.mxu0 0.0
    %267 = vmatpush.msra.mxu0 0.0
    %268 = vmatpush.msra.mxu0 0.0
    %269 = vmatpush.msra.mxu0 0.0
    %270 = vmatpush.msra.mxu0 0.0
    %271 = vmatpush.msra.mxu0 0.0
    %272 = vmatpush.msra.mxu0 0.0
    %273 = vmatpush.msra.mxu0 %v255
    %274 = vmatpush.msra.mxu0 %v166
    %275 = vmatmul.f32.gmra.mxu0 %v253
    %v276 = vpop.f32.mrf.mxu0
    %v277 = vadd.f32 0.0, %v276
    %278 = vdwg.mxu0
    %279 = vmatpush.msra.mxu0 0.0
    %280 = vmatpush.msra.mxu0 0.0
    %281 = vmatpush.msra.mxu0 0.0
    %282 = vmatpush.msra.mxu0 0.0
    %283 = vmatpush.msra.mxu0 0.0
    %284 = vmatpush.msra.mxu0 0.0
    %285 = vmatpush.msra.mxu0 0.0
    %286 = vmatpush.msra.mxu0 0.0
    %287 = vmatpush.msra.mxu0 0.0
    %288 = vmatpush.msra.mxu0 0.0
    %289 = vmatpush.msra.mxu0 0.0
    %290 = vmatpush.msra.mxu0 0.0
    %291 = vmatpush.msra.mxu0 0.0
    %292 = vmatpush.msra.mxu0 0.0
    %293 = vmatpush.msra.mxu0 %v257
    %294 = vmatpush.msra.mxu0 %v167
    %295 = vmatmul.f32.gmra.mxu0 %v253
    %v296 = vpop.f32.mrf.mxu0
    %v297 = vadd.f32 0.0, %v296
    %298 = vdwg.mxu0
    %v299 = vadd.f32 %v248, %v277
    %v300 = vadd.f32 %v249, %v297
    %v301 = vld [vmem:[#allocation2 + $0x8] sm:$0xff]
    %v302 = vld [vmem:[#allocation2 + $0x10] sm:$0xff]
    %v303 = vld [vmem:[#allocation2 + $0x18] sm:$0xff]
    %v304 = vld [vmem:[#allocation2 + $0x28] sm:$0xf]
    %v305 = vld [vmem:[#allocation2 + $0x30] sm:$0xf]
    %v306 = vld [vmem:[#allocation2 + $0x38] sm:$0xf]
    %s307 = scalar_lea.vmem [#allocation6], 8
    %v308 = vld [vmem:[%s307] sm:$0xf]
    %315 = vrot.lane.b32.xlu0 %v301, 126
    %v316 = vpop.permute.xlu0 %315
    %317 = vrot.lane.b32.xlu0 %v302, 126
    %v318 = vpop.permute.xlu0 %317
    %319 = vrot.lane.b32.xlu0 %v303, 126
    %v320 = vpop.permute.xlu0 %319
    %321 = vrot.lane.b32.xlu0 %v304, 126
    %v322 = vpop.permute.xlu0 %321
    %323 = vrot.lane.b32.xlu0 %v305, 126
    %v324 = vpop.permute.xlu0 %323
    %325 = vrot.lane.b32.xlu0 %v306, 126
    %v326 = vpop.permute.xlu0 %325
    %vm327 = vcmask 1031168
    %v328 = vsel %vm327, %v316, %v318
    %v329 = vsel %vm327, %v318, %v320
    %v330 = vsel %vm327, %v322, %v324
    %v331 = vsel %vm327, %v324, %v326
    %v335 = vsel %vm197, %v308, 0
    %v337 = vsel %vm201, %v330, 0
    %v339 = vsel %vm201, %v331, 0
    %341 = vmatpush.msra.mxu0 0.0
    %342 = vmatpush.msra.mxu0 0.0
    %343 = vmatpush.msra.mxu0 0.0
    %344 = vmatpush.msra.mxu0 0.0
    %345 = vmatpush.msra.mxu0 0.0
    %346 = vmatpush.msra.mxu0 0.0
    %347 = vmatpush.msra.mxu0 0.0
    %348 = vmatpush.msra.mxu0 0.0
    %349 = vmatpush.msra.mxu0 0.0
    %350 = vmatpush.msra.mxu0 0.0
    %351 = vmatpush.msra.mxu0 0.0
    %352 = vmatpush.msra.mxu0 0.0
    %353 = vmatpush.msra.mxu0 0.0
    %354 = vmatpush.msra.mxu0 0.0
    %355 = vmatpush.msra.mxu0 %v337
    %356 = vmatpush.msra.mxu0 %v328
    %357 = vmatmul.f32.gmra.mxu0 %v335
    %v358 = vpop.f32.mrf.mxu0
    %v359 = vadd.f32 0.0, %v358
    %360 = vdwg.mxu0
    %361 = vmatpush.msra.mxu0 0.0
    %362 = vmatpush.msra.mxu0 0.0
    %363 = vmatpush.msra.mxu0 0.0
    %364 = vmatpush.msra.mxu0 0.0
    %365 = vmatpush.msra.mxu0 0.0
    %366 = vmatpush.msra.mxu0 0.0
    %367 = vmatpush.msra.mxu0 0.0
    %368 = vmatpush.msra.mxu0 0.0
    %369 = vmatpush.msra.mxu0 0.0
    %370 = vmatpush.msra.mxu0 0.0
    %371 = vmatpush.msra.mxu0 0.0
    %372 = vmatpush.msra.mxu0 0.0
    %373 = vmatpush.msra.mxu0 0.0
    %374 = vmatpush.msra.mxu0 0.0
    %375 = vmatpush.msra.mxu0 %v339
    %376 = vmatpush.msra.mxu0 %v329
    %377 = vmatmul.f32.gmra.mxu0 %v335
    %v378 = vpop.f32.mrf.mxu0
    %v379 = vadd.f32 0.0, %v378
    %380 = vdwg.mxu0
    %v381 = vmul.f32 %v359, %v115
    %v382 = vmul.f32 %v379, %v116
    %v383 = vadd.f32 %v299, %v381
    %v384 = vadd.f32 %v300, %v382
    %v385 = vmax.f32 %v383, 0.0
    %v386 = vmax.f32 %v384, 0.0
    %389 = vrot.lane.b32.xlu0 %v385, 32
    %v390 = vpop.permute.xlu0 %389
    %391 = vrot.lane.b32.xlu0 %v386, 32
    %v392 = vpop.permute.xlu0 %391
    %v393 = vsel %vm137, %v390, %v392
    %397 = vst.msk [vmem:[#allocation2 + $0x8] sm:$0xf] %vm142, %v390
    %398 = vst [vmem:[#allocation2 + $0x10] sm:$0xf] %v393
    %399 = vst.msk [vmem:[#allocation2 + $0x18] sm:$0xf] %vm68, %v392
    %v400 = vrot.slane %v385, 4
    %v401 = vrot.slane %v386, 4
    %404 = vst [vmem:[#allocation2 + $0x8] sm:$0xf0] %v400
    %405 = vst [vmem:[#allocation2 + $0x10] sm:$0xf0] %v401
    %406 = vrot.lane.b32.xlu0 %v385, 96
    %v407 = vpop.permute.xlu0 %406
    %408 = vrot.lane.b32.xlu0 %v386, 96
    %v409 = vpop.permute.xlu0 %408
    %v410 = vsel %vm156, %v407, %v409
    %414 = vst.msk [vmem:[#allocation2 + $0x20] sm:$0xf] %vm74, %v407
    %415 = vst [vmem:[#allocation2 + $0x28] sm:$0xf] %v410
    %416 = vst.msk [vmem:[#allocation2 + $0x30] sm:$0xf] %vm163, %v409
    %v417 = vld [vmem:[#allocation3] sm:$0xf]
    %v418 = vld [vmem:[#allocation3 + $0x8] sm:$0xf]
    %v419 = vld [vmem:[#allocation2] sm:$0xff]
    %v420 = vld [vmem:[#allocation2 + $0x8] sm:$0xff]
    %v421 = vld [vmem:[#allocation2 + $0x10] sm:$0xff]
    %v422 = vld [vmem:[#allocation2 + $0x20] sm:$0xf]
    %v423 = vld [vmem:[#allocation2 + $0x28] sm:$0xf]
    %v424 = vld [vmem:[#allocation2 + $0x30] sm:$0xf]
    %v425 = vld [vmem:[#allocation8] sm:$0xf]
    %432 = vrot.lane.b32.xlu0 %v419, 2
    %v433 = vpop.permute.xlu0 %432
    %434 = vrot.lane.b32.xlu0 %v420, 2
    %v435 = vpop.permute.xlu0 %434
    %436 = vrot.lane.b32.xlu0 %v421, 2
    %v437 = vpop.permute.xlu0 %436
    %438 = vrot.lane.b32.xlu0 %v422, 2
    %v439 = vpop.permute.xlu0 %438
    %440 = vrot.lane.b32.xlu0 %v423, 2
    %v441 = vpop.permute.xlu0 %440
    %442 = vrot.lane.b32.xlu0 %v424, 2
    %v443 = vpop.permute.xlu0 %442
    %v444 = vsel %vm190, %v433, %v435
    %v445 = vsel %vm190, %v435, %v437
    %v446 = vsel %vm190, %v439, %v441
    %v447 = vsel %vm190, %v441, %v443
    %v451 = vsel %vm197, %v425, 0
    %v453 = vsel %vm201, %v446, 0
    %v455 = vsel %vm201, %v447, 0
    %457 = vmatpush.msra.mxu0 0.0
    %458 = vmatpush.msra.mxu0 0.0
    %459 = vmatpush.msra.mxu0 0.0
    %460 = vmatpush.msra.mxu0 0.0
    %461 = vmatpush.msra.mxu0 0.0
    %462 = vmatpush.msra.mxu0 0.0
    %463 = vmatpush.msra.mxu0 0.0
    %464 = vmatpush.msra.mxu0 0.0
    %465 = vmatpush.msra.mxu0 0.0
    %466 = vmatpush.msra.mxu0 0.0
    %467 = vmatpush.msra.mxu0 0.0
    %468 = vmatpush.msra.mxu0 0.0
    %469 = vmatpush.msra.mxu0 0.0
    %470 = vmatpush.msra.mxu0 0.0
    %471 = vmatpush.msra.mxu0 %v453
    %472 = vmatpush.msra.mxu0 %v444
    %473 = vmatmul.f32.gmra.mxu0 %v451
    %v474 = vpop.f32.mrf.mxu0
    %v475 = vadd.f32 0.0, %v474
    %476 = vdwg.mxu0
    %477 = vmatpush.msra.mxu0 0.0
    %478 = vmatpush.msra.mxu0 0.0
    %479 = vmatpush.msra.mxu0 0.0
    %480 = vmatpush.msra.mxu0 0.0
    %481 = vmatpush.msra.mxu0 0.0
    %482 = vmatpush.msra.mxu0 0.0
    %483 = vmatpush.msra.mxu0 0.0
    %484 = vmatpush.msra.mxu0 0.0
    %485 = vmatpush.msra.mxu0 0.0
    %486 = vmatpush.msra.mxu0 0.0
    %487 = vmatpush.msra.mxu0 0.0
    %488 = vmatpush.msra.mxu0 0.0
    %489 = vmatpush.msra.mxu0 0.0
    %490 = vmatpush.msra.mxu0 0.0
    %491 = vmatpush.msra.mxu0 %v455
    %492 = vmatpush.msra.mxu0 %v445
    %493 = vmatmul.f32.gmra.mxu0 %v451
    %v494 = vpop.f32.mrf.mxu0
    %v495 = vadd.f32 0.0, %v494
    %496 = vdwg.mxu0
    %v497 = vmul.f32 %v475, %v109
    %v498 = vmul.f32 %v495, %v110
    %v499 = vadd.f32 %v127, %v497
    %v500 = vadd.f32 %v127, %v498
    %s501 = scalar_lea.vmem [#allocation8], 4
    %v502 = vld [vmem:[%s501] sm:$0xf]
    %v504 = vsel %vm197, %v502, 0
    %v506 = vsel %vm201, %v423, 0
    %v508 = vsel %vm201, %v424, 0
    %510 = vmatpush.msra.mxu0 0.0
    %511 = vmatpush.msra.mxu0 0.0
    %512 = vmatpush.msra.mxu0 0.0
    %513 = vmatpush.msra.mxu0 0.0
    %514 = vmatpush.msra.mxu0 0.0
    %515 = vmatpush.msra.mxu0 0.0
    %516 = vmatpush.msra.mxu0 0.0
    %517 = vmatpush.msra.mxu0 0.0
    %518 = vmatpush.msra.mxu0 0.0
    %519 = vmatpush.msra.mxu0 0.0
    %520 = vmatpush.msra.mxu0 0.0
    %521 = vmatpush.msra.mxu0 0.0
    %522 = vmatpush.msra.mxu0 0.0
    %523 = vmatpush.msra.mxu0 0.0
    %524 = vmatpush.msra.mxu0 %v506
    %525 = vmatpush.msra.mxu0 %v420
    %526 = vmatmul.f32.gmra.mxu0 %v504
    %v527 = vpop.f32.mrf.mxu0
    %v528 = vadd.f32 0.0, %v527
    %529 = vdwg.mxu0
    %530 = vmatpush.msra.mxu0 0.0
    %531 = vmatpush.msra.mxu0 0.0
    %532 = vmatpush.msra.mxu0 0.0
    %533 = vmatpush.msra.mxu0 0.0
    %534 = vmatpush.msra.mxu0 0.0
    %535 = vmatpush.msra.mxu0 0.0
    %536 = vmatpush.msra.mxu0 0.0
    %537 = vmatpush.msra.mxu0 0.0
    %538 = vmatpush.msra.mxu0 0.0
    %539 = vmatpush.msra.mxu0 0.0
    %540 = vmatpush.msra.mxu0 0.0
    %541 = vmatpush.msra.mxu0 0.0
    %542 = vmatpush.msra.mxu0 0.0
    %543 = vmatpush.msra.mxu0 0.0
    %544 = vmatpush.msra.mxu0 %v508
    %545 = vmatpush.msra.mxu0 %v421
    %546 = vmatmul.f32.gmra.mxu0 %v504
    %v547 = vpop.f32.mrf.mxu0
    %v548 = vadd.f32 0.0, %v547
    %549 = vdwg.mxu0
    %v550 = vadd.f32 %v499, %v528
    %v551 = vadd.f32 %v500, %v548
    %v552 = vld [vmem:[#allocation2 + $0x8] sm:$0xff]
    %v553 = vld [vmem:[#allocation2 + $0x10] sm:$0xff]
    %v554 = vld [vmem:[#allocation2 + $0x18] sm:$0xff]
    %v555 = vld [vmem:[#allocation2 + $0x28] sm:$0xf]
    %v556 = vld [vmem:[#allocation2 + $0x30] sm:$0xf]
    %v557 = vld [vmem:[#allocation2 + $0x38] sm:$0xf]
    %s558 = scalar_lea.vmem [#allocation8], 8
    %v559 = vld [vmem:[%s558] sm:$0xf]
    %566 = vrot.lane.b32.xlu0 %v552, 126
    %v567 = vpop.permute.xlu0 %566
    %568 = vrot.lane.b32.xlu0 %v553, 126
    %v569 = vpop.permute.xlu0 %568
    %570 = vrot.lane.b32.xlu0 %v554, 126
    %v571 = vpop.permute.xlu0 %570
    %572 = vrot.lane.b32.xlu0 %v555, 126
    %v573 = vpop.permute.xlu0 %572
    %574 = vrot.lane.b32.xlu0 %v556, 126
    %v575 = vpop.permute.xlu0 %574
    %576 = vrot.lane.b32.xlu0 %v557, 126
    %v577 = vpop.permute.xlu0 %576
    %v578 = vsel %vm327, %v567, %v569
    %v579 = vsel %vm327, %v569, %v571
    %v580 = vsel %vm327, %v573, %v575
    %v581 = vsel %vm327, %v575, %v577
    %v585 = vsel %vm197, %v559, 0
    %v587 = vsel %vm201, %v580, 0
    %v589 = vsel %vm201, %v581, 0
    %591 = vmatpush.msra.mxu0 0.0
    %592 = vmatpush.msra.mxu0 0.0
    %593 = vmatpush.msra.mxu0 0.0
    %594 = vmatpush.msra.mxu0 0.0
    %595 = vmatpush.msra.mxu0 0.0
    %596 = vmatpush.msra.mxu0 0.0
    %597 = vmatpush.msra.mxu0 0.0
    %598 = vmatpush.msra.mxu0 0.0
    %599 = vmatpush.msra.mxu0 0.0
    %600 = vmatpush.msra.mxu0 0.0
    %601 = vmatpush.msra.mxu0 0.0
    %602 = vmatpush.msra.mxu0 0.0
    %603 = vmatpush.msra.mxu0 0.0
    %604 = vmatpush.msra.mxu0 0.0
    %605 = vmatpush.msra.mxu0 %v587
    %606 = vmatpush.msra.mxu0 %v578
    %607 = vmatmul.f32.gmra.mxu0 %v585
    %v608 = vpop.f32.mrf.mxu0
    %v609 = vadd.f32 0.0, %v608
    %610 = vdwg.mxu0
    %611 = vmatpush.msra.mxu0 0.0
    %612 = vmatpush.msra.mxu0 0.0
    %613 = vmatpush.msra.mxu0 0.0
    %614 = vmatpush.msra.mxu0 0.0
    %615 = vmatpush.msra.mxu0 0.0
    %616 = vmatpush.msra.mxu0 0.0
    %617 = vmatpush.msra.mxu0 0.0
    %618 = vmatpush.msra.mxu0 0.0
    %619 = vmatpush.msra.mxu0 0.0
    %620 = vmatpush.msra.mxu0 0.0
    %621 = vmatpush.msra.mxu0 0.0
    %622 = vmatpush.msra.mxu0 0.0
    %623 = vmatpush.msra.mxu0 0.0
    %624 = vmatpush.msra.mxu0 0.0
    %625 = vmatpush.msra.mxu0 %v589
    %626 = vmatpush.msra.mxu0 %v579
    %627 = vmatmul.f32.gmra.mxu0 %v585
    %v628 = vpop.f32.mrf.mxu0
    %v629 = vadd.f32 0.0, %v628
    %630 = vdwg.mxu0
    %v631 = vmul.f32 %v609, %v115
    %v632 = vmul.f32 %v629, %v116
    %v633 = vadd.f32 %v550, %v631
    %v634 = vadd.f32 %v551, %v632
    %v635 = vadd.f32 %v417, %v633
    %v636 = vadd.f32 %v418, %v634
    %637 = vst [vmem:[#allocation9] sm:$0xf] %v635
    %638 = vst [vmem:[#allocation9 + $0x8] sm:$0xf] %v636
    %v639 = vld [vmem:[#allocation3] sm:$0xf0]
    %v640 = vld [vmem:[#allocation3 + $0x8] sm:$0xf0]
    %v643 = vrot.slane %v639, 4
    %v644 = vrot.slane %v640, 4
    %645 = vrot.lane.b32.xlu0 %v643, 32
    %v646 = vpop.permute.xlu0 %645
    %647 = vrot.lane.b32.xlu0 %v644, 32
    %v648 = vpop.permute.xlu0 %647
    %v649 = vsel %vm137, %v646, %v648
    %653 = vst.msk [vmem:[#allocation2 + $0x8] sm:$0xf] %vm142, %v646
    %654 = vst [vmem:[#allocation2 + $0x10] sm:$0xf] %v649
    %655 = vst.msk [vmem:[#allocation2 + $0x18] sm:$0xf] %vm68, %v648
    %656 = vst [vmem:[#allocation2 + $0x8] sm:$0xf0] %v639
    %657 = vst [vmem:[#allocation2 + $0x10] sm:$0xf0] %v640
    %658 = vrot.lane.b32.xlu0 %v643, 96
    %v659 = vpop.permute.xlu0 %658
    %660 = vrot.lane.b32.xlu0 %v644, 96
    %v661 = vpop.permute.xlu0 %660
    %v662 = vsel %vm156, %v659, %v661
    %666 = vst.msk [vmem:[#allocation2 + $0x20] sm:$0xf] %vm74, %v659
    %667 = vst [vmem:[#allocation2 + $0x28] sm:$0xf] %v662
    %668 = vst.msk [vmem:[#allocation2 + $0x30] sm:$0xf] %vm163, %v661
    %v669 = vld [vmem:[#allocation2] sm:$0xff]
    %v670 = vld [vmem:[#allocation2 + $0x8] sm:$0xff]
    %v671 = vld [vmem:[#allocation2 + $0x10] sm:$0xff]
    %v672 = vld [vmem:[#allocation2 + $0x20] sm:$0xf]
    %v673 = vld [vmem:[#allocation2 + $0x28] sm:$0xf]
    %v674 = vld [vmem:[#allocation2 + $0x30] sm:$0xf]
    %v675 = vld [vmem:[#allocation6] sm:$0xf]
    %682 = vrot.lane.b32.xlu0 %v669, 2
    %v683 = vpop.permute.xlu0 %682
    %684 = vrot.lane.b32.xlu0 %v670, 2
    %v685 = vpop.permute.xlu0 %684
    %686 = vrot.lane.b32.xlu0 %v671, 2
    %v687 = vpop.permute.xlu0 %686
    %688 = vrot.lane.b32.xlu0 %v672, 2
    %v689 = vpop.permute.xlu0 %688
    %690 = vrot.lane.b32.xlu0 %v673, 2
    %v691 = vpop.permute.xlu0 %690
    %692 = vrot.lane.b32.xlu0 %v674, 2
    %v693 = vpop.permute.xlu0 %692
    %v694 = vsel %vm190, %v683, %v685
    %v695 = vsel %vm190, %v685, %v687
    %v696 = vsel %vm190, %v689, %v691
    %v697 = vsel %vm190, %v691, %v693
    %v701 = vsel %vm197, %v675, 0
    %v703 = vsel %vm201, %v696, 0
    %v705 = vsel %vm201, %v697, 0
    %707 = vmatpush.msra.mxu0 0.0
    %708 = vmatpush.msra.mxu0 0.0
    %709 = vmatpush.msra.mxu0 0.0
    %710 = vmatpush.msra.mxu0 0.0
    %711 = vmatpush.msra.mxu0 0.0
    %712 = vmatpush.msra.mxu0 0.0
    %713 = vmatpush.msra.mxu0 0.0
    %714 = vmatpush.msra.mxu0 0.0
    %715 = vmatpush.msra.mxu0 0.0
    %716 = vmatpush.msra.mxu0 0.0
    %717 = vmatpush.msra.mxu0 0.0
    %718 = vmatpush.msra.mxu0 0.0
    %719 = vmatpush.msra.mxu0 0.0
    %720 = vmatpush.msra.mxu0 0.0
    %721 = vmatpush.msra.mxu0 %v703
    %722 = vmatpush.msra.mxu0 %v694
    %723 = vmatmul.f32.gmra.mxu0 %v701
    %v724 = vpop.f32.mrf.mxu0
    %v725 = vadd.f32 0.0, %v724
    %726 = vdwg.mxu0
    %727 = vmatpush.msra.mxu0 0.0
    %728 = vmatpush.msra.mxu0 0.0
    %729 = vmatpush.msra.mxu0 0.0
    %730 = vmatpush.msra.mxu0 0.0
    %731 = vmatpush.msra.mxu0 0.0
    %732 = vmatpush.msra.mxu0 0.0
    %733 = vmatpush.msra.mxu0 0.0
    %734 = vmatpush.msra.mxu0 0.0
    %735 = vmatpush.msra.mxu0 0.0
    %736 = vmatpush.msra.mxu0 0.0
    %737 = vmatpush.msra.mxu0 0.0
    %738 = vmatpush.msra.mxu0 0.0
    %739 = vmatpush.msra.mxu0 0.0
    %740 = vmatpush.msra.mxu0 0.0
    %741 = vmatpush.msra.mxu0 %v705
    %742 = vmatpush.msra.mxu0 %v695
    %743 = vmatmul.f32.gmra.mxu0 %v701
    %v744 = vpop.f32.mrf.mxu0
    %v745 = vadd.f32 0.0, %v744
    %746 = vdwg.mxu0
    %v747 = vmul.f32 %v725, %v109
    %v748 = vmul.f32 %v745, %v110
    %v749 = vadd.f32 %v121, %v747
    %v750 = vadd.f32 %v121, %v748
    %v751 = vld [vmem:[%s250] sm:$0xf]
    %v753 = vsel %vm197, %v751, 0
    %v755 = vsel %vm201, %v673, 0
    %v757 = vsel %vm201, %v674, 0
    %759 = vmatpush.msra.mxu0 0.0
    %760 = vmatpush.msra.mxu0 0.0
    %761 = vmatpush.msra.mxu0 0.0
    %762 = vmatpush.msra.mxu0 0.0
    %763 = vmatpush.msra.mxu0 0.0
    %764 = vmatpush.msra.mxu0 0.0
    %765 = vmatpush.msra.mxu0 0.0
    %766 = vmatpush.msra.mxu0 0.0
    %767 = vmatpush.msra.mxu0 0.0
    %768 = vmatpush.msra.mxu0 0.0
    %769 = vmatpush.msra.mxu0 0.0
    %770 = vmatpush.msra.mxu0 0.0
    %771 = vmatpush.msra.mxu0 0.0
    %772 = vmatpush.msra.mxu0 0.0
    %773 = vmatpush.msra.mxu0 %v755
    %774 = vmatpush.msra.mxu0 %v670
    %775 = vmatmul.f32.gmra.mxu0 %v753
    %v776 = vpop.f32.mrf.mxu0
    %v777 = vadd.f32 0.0, %v776
    %778 = vdwg.mxu0
    %779 = vmatpush.msra.mxu0 0.0
    %780 = vmatpush.msra.mxu0 0.0
    %781 = vmatpush.msra.mxu0 0.0
    %782 = vmatpush.msra.mxu0 0.0
    %783 = vmatpush.msra.mxu0 0.0
    %784 = vmatpush.msra.mxu0 0.0
    %785 = vmatpush.msra.mxu0 0.0
    %786 = vmatpush.msra.mxu0 0.0
    %787 = vmatpush.msra.mxu0 0.0
    %788 = vmatpush.msra.mxu0 0.0
    %789 = vmatpush.msra.mxu0 0.0
    %790 = vmatpush.msra.mxu0 0.0
    %791 = vmatpush.msra.mxu0 0.0
    %792 = vmatpush.msra.mxu0 0.0
    %793 = vmatpush.msra.mxu0 %v757
    %794 = vmatpush.msra.mxu0 %v671
    %795 = vmatmul.f32.gmra.mxu0 %v753
    %v796 = vpop.f32.mrf.mxu0
    %v797 = vadd.f32 0.0, %v796
    %798 = vdwg.mxu0
    %v799 = vadd.f32 %v749, %v777
    %v800 = vadd.f32 %v750, %v797
    %v801 = vld [vmem:[#allocation2 + $0x8] sm:$0xff]
    %v802 = vld [vmem:[#allocation2 + $0x10] sm:$0xff]
    %v803 = vld [vmem:[#allocation2 + $0x18] sm:$0xff]
    %v804 = vld [vmem:[#allocation2 + $0x28] sm:$0xf]
    %v805 = vld [vmem:[#allocation2 + $0x30] sm:$0xf]
    %v806 = vld [vmem:[#allocation2 + $0x38] sm:$0xf]
    %v807 = vld [vmem:[%s307] sm:$0xf]
    %814 = vrot.lane.b32.xlu0 %v801, 126
    %v815 = vpop.permute.xlu0 %814
    %816 = vrot.lane.b32.xlu0 %v802, 126
    %v817 = vpop.permute.xlu0 %816
    %818 = vrot.lane.b32.xlu0 %v803, 126
    %v819 = vpop.permute.xlu0 %818
    %820 = vrot.lane.b32.xlu0 %v804, 126
    %v821 = vpop.permute.xlu0 %820
    %822 = vrot.lane.b32.xlu0 %v805, 126
    %v823 = vpop.permute.xlu0 %822
    %824 = vrot.lane.b32.xlu0 %v806, 126
    %v825 = vpop.permute.xlu0 %824
    %v826 = vsel %vm327, %v815, %v817
    %v827 = vsel %vm327, %v817, %v819
    %v828 = vsel %vm327, %v821, %v823
    %v829 = vsel %vm327, %v823, %v825
    %v833 = vsel %vm197, %v807, 0
    %v835 = vsel %vm201, %v828, 0
    %v837 = vsel %vm201, %v829, 0
    %839 = vmatpush.msra.mxu0 0.0
    %840 = vmatpush.msra.mxu0 0.0
    %841 = vmatpush.msra.mxu0 0.0
    %842 = vmatpush.msra.mxu0 0.0
    %843 = vmatpush.msra.mxu0 0.0
    %844 = vmatpush.msra.mxu0 0.0
    %845 = vmatpush.msra.mxu0 0.0
    %846 = vmatpush.msra.mxu0 0.0
    %847 = vmatpush.msra.mxu0 0.0
    %848 = vmatpush.msra.mxu0 0.0
    %849 = vmatpush.msra.mxu0 0.0
    %850 = vmatpush.msra.mxu0 0.0
    %851 = vmatpush.msra.mxu0 0.0
    %852 = vmatpush.msra.mxu0 0.0
    %853 = vmatpush.msra.mxu0 %v835
    %854 = vmatpush.msra.mxu0 %v826
    %855 = vmatmul.f32.gmra.mxu0 %v833
    %v856 = vpop.f32.mrf.mxu0
    %v857 = vadd.f32 0.0, %v856
    %858 = vdwg.mxu0
    %859 = vmatpush.msra.mxu0 0.0
    %860 = vmatpush.msra.mxu0 0.0
    %861 = vmatpush.msra.mxu0 0.0
    %862 = vmatpush.msra.mxu0 0.0
    %863 = vmatpush.msra.mxu0 0.0
    %864 = vmatpush.msra.mxu0 0.0
    %865 = vmatpush.msra.mxu0 0.0
    %866 = vmatpush.msra.mxu0 0.0
    %867 = vmatpush.msra.mxu0 0.0
    %868 = vmatpush.msra.mxu0 0.0
    %869 = vmatpush.msra.mxu0 0.0
    %870 = vmatpush.msra.mxu0 0.0
    %871 = vmatpush.msra.mxu0 0.0
    %872 = vmatpush.msra.mxu0 0.0
    %873 = vmatpush.msra.mxu0 %v837
    %874 = vmatpush.msra.mxu0 %v827
    %875 = vmatmul.f32.gmra.mxu0 %v833
    %v876 = vpop.f32.mrf.mxu0
    %v877 = vadd.f32 0.0, %v876
    %878 = vdwg.mxu0
    %v879 = vmul.f32 %v857, %v115
    %v880 = vmul.f32 %v877, %v116
    %v881 = vadd.f32 %v799, %v879
    %v882 = vadd.f32 %v800, %v880
    %v883 = vmax.f32 %v881, 0.0
    %v884 = vmax.f32 %v882, 0.0
    %887 = vrot.lane.b32.xlu0 %v883, 32
    %v888 = vpop.permute.xlu0 %887
    %889 = vrot.lane.b32.xlu0 %v884, 32
    %v890 = vpop.permute.xlu0 %889
    %v891 = vsel %vm137, %v888, %v890
    %895 = vst.msk [vmem:[#allocation2 + $0x8] sm:$0xf] %vm142, %v888
    %896 = vst [vmem:[#allocation2 + $0x10] sm:$0xf] %v891
    %897 = vst.msk [vmem:[#allocation2 + $0x18] sm:$0xf] %vm68, %v890
    %v898 = vrot.slane %v883, 4
    %v899 = vrot.slane %v884, 4
    %902 = vst [vmem:[#allocation2 + $0x8] sm:$0xf0] %v898
    %903 = vst [vmem:[#allocation2 + $0x10] sm:$0xf0] %v899
    %904 = vrot.lane.b32.xlu0 %v883, 96
    %v905 = vpop.permute.xlu0 %904
    %906 = vrot.lane.b32.xlu0 %v884, 96
    %v907 = vpop.permute.xlu0 %906
    %v908 = vsel %vm156, %v905, %v907
    %912 = vst.msk [vmem:[#allocation2 + $0x20] sm:$0xf] %vm74, %v905
    %913 = vst [vmem:[#allocation2 + $0x28] sm:$0xf] %v908
    %914 = vst.msk [vmem:[#allocation2 + $0x30] sm:$0xf] %vm163, %v907
    %v915 = vld [vmem:[#allocation3] sm:$0xf0]
    %v916 = vld [vmem:[#allocation3 + $0x8] sm:$0xf0]
    %v917 = vld [vmem:[#allocation2] sm:$0xff]
    %v918 = vld [vmem:[#allocation2 + $0x8] sm:$0xff]
    %v919 = vld [vmem:[#allocation2 + $0x10] sm:$0xff]
    %v920 = vld [vmem:[#allocation2 + $0x20] sm:$0xf]
    %v921 = vld [vmem:[#allocation2 + $0x28] sm:$0xf]
    %v922 = vld [vmem:[#allocation2 + $0x30] sm:$0xf]
    %v923 = vld [vmem:[#allocation8] sm:$0xf]
    %930 = vrot.lane.b32.xlu0 %v917, 2
    %v931 = vpop.permute.xlu0 %930
    %932 = vrot.lane.b32.xlu0 %v918, 2
    %v933 = vpop.permute.xlu0 %932
    %934 = vrot.lane.b32.xlu0 %v919, 2
    %v935 = vpop.permute.xlu0 %934
    %936 = vrot.lane.b32.xlu0 %v920, 2
    %v937 = vpop.permute.xlu0 %936
    %938 = vrot.lane.b32.xlu0 %v921, 2
    %v939 = vpop.permute.xlu0 %938
    %940 = vrot.lane.b32.xlu0 %v922, 2
    %v941 = vpop.permute.xlu0 %940
    %v942 = vsel %vm190, %v931, %v933
    %v943 = vsel %vm190, %v933, %v935
    %v944 = vsel %vm190, %v937, %v939
    %v945 = vsel %vm190, %v939, %v941
    %v949 = vsel %vm197, %v923, 0
    %v951 = vsel %vm201, %v944, 0
    %v953 = vsel %vm201, %v945, 0
    %955 = vmatpush.msra.mxu0 0.0
    %956 = vmatpush.msra.mxu0 0.0
    %957 = vmatpush.msra.mxu0 0.0
    %958 = vmatpush.msra.mxu0 0.0
    %959 = vmatpush.msra.mxu0 0.0
    %960 = vmatpush.msra.mxu0 0.0
    %961 = vmatpush.msra.mxu0 0.0
    %962 = vmatpush.msra.mxu0 0.0
    %963 = vmatpush.msra.mxu0 0.0
    %964 = vmatpush.msra.mxu0 0.0
    %965 = vmatpush.msra.mxu0 0.0
    %966 = vmatpush.msra.mxu0 0.0
    %967 = vmatpush.msra.mxu0 0.0
    %968 = vmatpush.msra.mxu0 0.0
    %969 = vmatpush.msra.mxu0 %v951
    %970 = vmatpush.msra.mxu0 %v942
    %971 = vmatmul.f32.gmra.mxu0 %v949
    %v972 = vpop.f32.mrf.mxu0
    %v973 = vadd.f32 0.0, %v972
    %974 = vdwg.mxu0
    %975 = vmatpush.msra.mxu0 0.0
    %976 = vmatpush.msra.mxu0 0.0
    %977 = vmatpush.msra.mxu0 0.0
    %978 = vmatpush.msra.mxu0 0.0
    %979 = vmatpush.msra.mxu0 0.0
    %980 = vmatpush.msra.mxu0 0.0
    %981 = vmatpush.msra.mxu0 0.0
    %982 = vmatpush.msra.mxu0 0.0
    %983 = vmatpush.msra.mxu0 0.0
    %984 = vmatpush.msra.mxu0 0.0
    %985 = vmatpush.msra.mxu0 0.0
    %986 = vmatpush.msra.mxu0 0.0
    %987 = vmatpush.msra.mxu0 0.0
    %988 = vmatpush.msra.mxu0 0.0
    %989 = vmatpush.msra.mxu0 %v953
    %990 = vmatpush.msra.mxu0 %v943
    %991 = vmatmul.f32.gmra.mxu0 %v949
    %v992 = vpop.f32.mrf.mxu0
    %v993 = vadd.f32 0.0, %v992
    %994 = vdwg.mxu0
    %v995 = vmul.f32 %v973, %v109
    %v996 = vmul.f32 %v993, %v110
    %v997 = vadd.f32 %v127, %v995
    %v998 = vadd.f32 %v127, %v996
    %v999 = vld [vmem:[%s501] sm:$0xf]
    %v1001 = vsel %vm197, %v999, 0
    %v1003 = vsel %vm201, %v921, 0
    %v1005 = vsel %vm201, %v922, 0
    %1007 = vmatpush.msra.mxu0 0.0
    %1008 = vmatpush.msra.mxu0 0.0
    %1009 = vmatpush.msra.mxu0 0.0
    %1010 = vmatpush.msra.mxu0 0.0
    %1011 = vmatpush.msra.mxu0 0.0
    %1012 = vmatpush.msra.mxu0 0.0
    %1013 = vmatpush.msra.mxu0 0.0
    %1014 = vmatpush.msra.mxu0 0.0
    %1015 = vmatpush.msra.mxu0 0.0
    %1016 = vmatpush.msra.mxu0 0.0
    %1017 = vmatpush.msra.mxu0 0.0
    %1018 = vmatpush.msra.mxu0 0.0
    %1019 = vmatpush.msra.mxu0 0.0
    %1020 = vmatpush.msra.mxu0 0.0
    %1021 = vmatpush.msra.mxu0 %v1003
    %1022 = vmatpush.msra.mxu0 %v918
    %1023 = vmatmul.f32.gmra.mxu0 %v1001
    %v1024 = vpop.f32.mrf.mxu0
    %v1025 = vadd.f32 0.0, %v1024
    %1026 = vdwg.mxu0
    %1027 = vmatpush.msra.mxu0 0.0
    %1028 = vmatpush.msra.mxu0 0.0
    %1029 = vmatpush.msra.mxu0 0.0
    %1030 = vmatpush.msra.mxu0 0.0
    %1031 = vmatpush.msra.mxu0 0.0
    %1032 = vmatpush.msra.mxu0 0.0
    %1033 = vmatpush.msra.mxu0 0.0
    %1034 = vmatpush.msra.mxu0 0.0
    %1035 = vmatpush.msra.mxu0 0.0
    %1036 = vmatpush.msra.mxu0 0.0
    %1037 = vmatpush.msra.mxu0 0.0
    %1038 = vmatpush.msra.mxu0 0.0
    %1039 = vmatpush.msra.mxu0 0.0
    %1040 = vmatpush.msra.mxu0 0.0
    %1041 = vmatpush.msra.mxu0 %v1005
    %1042 = vmatpush.msra.mxu0 %v919
    %1043 = vmatmul.f32.gmra.mxu0 %v1001
    %v1044 = vpop.f32.mrf.mxu0
    %v1045 = vadd.f32 0.0, %v1044
    %1046 = vdwg.mxu0
    %v1047 = vadd.f32 %v997, %v1025
    %v1048 = vadd.f32 %v998, %v1045
    %v1049 = vld [vmem:[#allocation2 + $0x8] sm:$0xff]
    %v1050 = vld [vmem:[#allocation2 + $0x10] sm:$0xff]
    %v1051 = vld [vmem:[#allocation2 + $0x18] sm:$0xff]
    %v1052 = vld [vmem:[#allocation2 + $0x28] sm:$0xf]
    %v1053 = vld [vmem:[#allocation2 + $0x30] sm:$0xf]
    %v1054 = vld [vmem:[#allocation2 + $0x38] sm:$0xf]
    %v1055 = vld [vmem:[%s558] sm:$0xf]
    %1062 = vrot.lane.b32.xlu0 %v1049, 126
    %v1063 = vpop.permute.xlu0 %1062
    %1064 = vrot.lane.b32.xlu0 %v1050, 126
    %v1065 = vpop.permute.xlu0 %1064
    %1066 = vrot.lane.b32.xlu0 %v1051, 126
    %v1067 = vpop.permute.xlu0 %1066
    %1068 = vrot.lane.b32.xlu0 %v1052, 126
    %v1069 = vpop.permute.xlu0 %1068
    %1070 = vrot.lane.b32.xlu0 %v1053, 126
    %v1071 = vpop.permute.xlu0 %1070
    %1072 = vrot.lane.b32.xlu0 %v1054, 126
    %v1073 = vpop.permute.xlu0 %1072
    %v1074 = vsel %vm327, %v1063, %v1065
    %v1075 = vsel %vm327, %v1065, %v1067
    %v1076 = vsel %vm327, %v1069, %v1071
    %v1077 = vsel %vm327, %v1071, %v1073
    %v1081 = vsel %vm197, %v1055, 0
    %v1083 = vsel %vm201, %v1076, 0
    %v1085 = vsel %vm201, %v1077, 0
    %1087 = vmatpush.msra.mxu0 0.0
    %1088 = vmatpush.msra.mxu0 0.0
    %1089 = vmatpush.msra.mxu0 0.0
    %1090 = vmatpush.msra.mxu0 0.0
    %1091 = vmatpush.msra.mxu0 0.0
    %1092 = vmatpush.msra.mxu0 0.0
    %1093 = vmatpush.msra.mxu0 0.0
    %1094 = vmatpush.msra.mxu0 0.0
    %1095 = vmatpush.msra.mxu0 0.0
    %1096 = vmatpush.msra.mxu0 0.0
    %1097 = vmatpush.msra.mxu0 0.0
    %1098 = vmatpush.msra.mxu0 0.0
    %1099 = vmatpush.msra.mxu0 0.0
    %1100 = vmatpush.msra.mxu0 0.0
    %1101 = vmatpush.msra.mxu0 %v1083
    %1102 = vmatpush.msra.mxu0 %v1074
    %1103 = vmatmul.f32.gmra.mxu0 %v1081
    %v1104 = vpop.f32.mrf.mxu0
    %v1105 = vadd.f32 0.0, %v1104
    %1106 = vdwg.mxu0
    %1107 = vmatpush.msra.mxu0 0.0
    %1108 = vmatpush.msra.mxu0 0.0
    %1109 = vmatpush.msra.mxu0 0.0
    %1110 = vmatpush.msra.mxu0 0.0
    %1111 = vmatpush.msra.mxu0 0.0
    %1112 = vmatpush.msra.mxu0 0.0
    %1113 = vmatpush.msra.mxu0 0.0
    %1114 = vmatpush.msra.mxu0 0.0
    %1115 = vmatpush.msra.mxu0 0.0
    %1116 = vmatpush.msra.mxu0 0.0
    %1117 = vmatpush.msra.mxu0 0.0
    %1118 = vmatpush.msra.mxu0 0.0
    %1119 = vmatpush.msra.mxu0 0.0
    %1120 = vmatpush.msra.mxu0 0.0
    %1121 = vmatpush.msra.mxu0 %v1085
    %1122 = vmatpush.msra.mxu0 %v1075
    %1123 = vmatmul.f32.gmra.mxu0 %v1081
    %v1124 = vpop.f32.mrf.mxu0
    %v1125 = vadd.f32 0.0, %v1124
    %1126 = vdwg.mxu0
    %v1127 = vmul.f32 %v1105, %v115
    %v1128 = vmul.f32 %v1125, %v116
    %v1129 = vadd.f32 %v1047, %v1127
    %v1130 = vadd.f32 %v1048, %v1128
    %v1133 = vrot.slane %v1129, 4
    %v1134 = vrot.slane %v1130, 4
    %v1137 = vadd.f32 %v915, %v1133
    %v1138 = vadd.f32 %v916, %v1134
    %1139 = vst [vmem:[#allocation9] sm:$0xf0] %v1137
    %1140 = vst [vmem:[#allocation9 + $0x8] sm:$0xf0] %v1138
    // Predicated region
    $region34: #{tpu_custom_call.1} parent=1 // pred_check
      _
    $region35: #{tpu_custom_call.1} parent=1 // pred_check_branch
      %1142 = sbr.rel (0) target = $region37
    $region36: #{tpu_custom_call.1} parent=1 // pred_region
      %1144 = vsyncadd [#allocation5], 0
      %s1146 = sshll.u32 [#allocation9], 4
      %s1147 = int_to_ptr.vmem [resolvable:$true] %s1146
      %s1148 = sshll.u32 %s5, 4
      %s1149 = int_to_ptr.hbm [resolvable:$true] %s1148
      %1151 = dma.vmem_to_hbm [thread:$0]  %s1147, 256, %s1149, [#allocation5]
    $region37: #{tpu_custom_call.1} parent=1 // pred_fallthru
      _
    // Predicated region
    $region38: #{tpu_custom_call.1} parent=1 // pred_check
      _
    $region39: #{tpu_custom_call.1} parent=1 // pred_check_branch
      %1153 = sbr.rel (0) target = $region41
    $region40: #{tpu_custom_call.1} parent=1 // pred_region
      %1155 = dma.done [#allocation5], 256
    $region41: #{tpu_custom_call.1} parent=1 // pred_fallthru
      _
    %1156 = vsyncpa [#allocation4], 1
    %1157 = vsyncpa [#allocation7], 1
    %1158 = vsyncpa [#allocation5], 1

</llo_original>
